<compile_context>
chip_gen: v5e
topology: v5e:2x2
jax: 0.10.0
libtpu: 0.0.40
codegen_flags: <defaults>
</compile_context>

<pallas_src>
import jax
import jax.numpy as jnp
from jax import lax
from jax.experimental import pallas as pl
from jax.experimental.pallas import tpu as pltpu


def sepconv_kernel(x_ref, vdw1_ref, w1s_ref, b1_ref, dw2_ref, w2f_ref, b2_ref,
                   o_ref, pad1_ref, pad2_ref):
    # x_ref:    (1, Ho, Wo, 4*C)  space-to-depth input block (planes P00|P01|P10|P11)
    # vdw1_ref: (4, 4*C)          per-window masked depthwise-1 weight vectors
    # w1s_ref:  (4*C, C)          pointwise-1 weight, BN1 scale folded, stacked 4x
    # b1_ref:   (1, C)            BN1 folded bias
    # dw2_ref:  (9, C)            depthwise-2 taps (row = kh*3 + kw)
    # w2f_ref:  (C, Cout)         pointwise-2 weight, BN2 scale folded
    # b2_ref:   (1, Cout)         BN2 folded bias
    # o_ref:    (1, Ho, Wo, Cout)
    # pad1_ref: VMEM (1, Ho+1, Wo+1, 4*C)  padded stride-2-conv input
    # pad2_ref: VMEM (1, Ho+2, Wo+2, C)    padded stride-1-conv input
    _, Ho, Wo, C4 = x_ref.shape
    C = pad2_ref.shape[3]
    Cout = o_ref.shape[3]

    # ---- stage 1: depthwise 3x3, stride 2, pad 1 (space-to-depth form) ------
    # Zero only the 1-element top/left halo, then write the interior once.
    pad1_ref[:, 0:1, :, :] = jnp.zeros((1, 1, Wo + 1, C4), jnp.float32)
    pad1_ref[:, 1:, 0:1, :] = jnp.zeros((1, Ho, 1, C4), jnp.float32)
    pad1_ref[:, 1:, 1:, :] = x_ref[...]

    # 4 unit-shift windows; weights are pre-masked per parity plane.
    acc = pad1_ref[:, 0:Ho, 0:Wo, :] * vdw1_ref[0:1, :]              # (dh=-1, dw=-1)
    acc = acc + pad1_ref[:, 0:Ho, 1:Wo + 1, :] * vdw1_ref[1:2, :]    # (dh=-1, dw= 0)
    acc = acc + pad1_ref[:, 1:Ho + 1, 0:Wo, :] * vdw1_ref[2:3, :]    # (dh= 0, dw=-1)
    acc = acc + pad1_ref[:, 1:Ho + 1, 1:Wo + 1, :] * vdw1_ref[3:4, :]  # (0, 0)

    # ---- stage 2: pointwise C->C (+ folded BN1 scale) + bias + ReLU ---------
    # Plane reduction is folded into the 4x-stacked weight: K = 4*C contraction.
    flat = acc.reshape(Ho * Wo, C4)
    h1 = jnp.dot(flat, w1s_ref[...], preferred_element_type=jnp.float32)
    h1 = jnp.maximum(h1 + b1_ref[...], 0.0)                          # (Ho*Wo, C)

    # ---- stage 3: depthwise 3x3, stride 1, pad 1 ----------------------------
    pad2_ref[:, 0:1, :, :] = jnp.zeros((1, 1, Wo + 2, C), jnp.float32)
    pad2_ref[:, Ho + 1:Ho + 2, :, :] = jnp.zeros((1, 1, Wo + 2, C), jnp.float32)
    pad2_ref[:, 1:Ho + 1, 0:1, :] = jnp.zeros((1, Ho, 1, C), jnp.float32)
    pad2_ref[:, 1:Ho + 1, Wo + 1:Wo + 2, :] = jnp.zeros((1, Ho, 1, C), jnp.float32)
    pad2_ref[:, 1:Ho + 1, 1:Wo + 1, :] = h1.reshape(1, Ho, Wo, C)

    acc2 = pad2_ref[:, 0:Ho, 0:Wo, :] * dw2_ref[0:1, :]
    for k in range(1, 9):                       # static -> fully unrolled
        kh, kw = k // 3, k % 3
        acc2 = acc2 + pad2_ref[:, kh:kh + Ho, kw:kw + Wo, :] * dw2_ref[k:k + 1, :]

    # ---- stage 4: pointwise C->Cout (+ folded BN2 scale) + bias + ReLU ------
    h2 = jnp.dot(acc2.reshape(Ho * Wo, C), w2f_ref[...],
                 preferred_element_type=jnp.float32)
    h2 = jnp.maximum(h2 + b2_ref[...], 0.0)
    o_ref[...] = h2.reshape(1, Ho, Wo, Cout)


def prepare_kernel_params(raw, eps=1e-5):
    """Fold BN (eval mode) into the pointwise weights and build the masked
    per-window depthwise-1 weight vectors for the space-to-depth layout."""
    (dw1, pw1, g1, be1, m1, v1, dw2, pw2, g2, be2, m2, v2) = raw
    C = dw1.shape[0]
    Cout = pw2.shape[0]

    t = dw1[:, 0, :, :]                              # (C, 3, 3), t[c, kh, kw]
    z = jnp.zeros((C,), jnp.float32)

    def tap(kh, kw):
        return t[:, kh, kw]

    # plane order along the 4*C axis: [P00 | P01 | P10 | P11], Pab = x[2i+a, 2j+b]
    v00 = jnp.concatenate([z, z, z, tap(0, 0)])                       # window (dh=-1, dw=-1)
    v01 = jnp.concatenate([z, z, tap(0, 1), tap(0, 2)])               # window (dh=-1, dw= 0)
    v10 = jnp.concatenate([z, tap(1, 0), z, tap(2, 0)])               # window (dh= 0, dw=-1)
    v11 = jnp.concatenate([tap(1, 1), tap(1, 2), tap(2, 1), tap(2, 2)])  # window (0, 0)
    vdw1 = jnp.stack([v00, v01, v10, v11], axis=0)                    # (4, 4*C)

    s1 = g1 / jnp.sqrt(v1 + eps)
    w1 = jnp.transpose(pw1[:, :, 0, 0], (1, 0)) * s1[None, :]         # (C, C), BN1 scale folded
    w1s = jnp.concatenate([w1, w1, w1, w1], axis=0)                   # (4*C, C) plane-sum folded
    b1 = (be1 - m1 * s1).reshape(1, C)

    dw2f = jnp.transpose(dw2[:, 0, :, :], (1, 2, 0)).reshape(9, C)    # (9, C), row = kh*3+kw

    s2 = g2 / jnp.sqrt(v2 + eps)
    w2f = jnp.transpose(pw2[:, :, 0, 0], (1, 0)) * s2[None, :]        # (C, Cout)
    b2 = (be2 - m2 * s2).reshape(1, Cout)
    return vdw1, w1s, b1, dw2f, w2f, b2


def sepconv_pallas(x_nchw, raw_params):
    """x_nchw: (N, C_in, H, W) float32.  Returns (N, C_out, H//2, W//2)."""
    N, C, H, W = x_nchw.shape
    assert H % 2 == 0 and W % 2 == 0, "kernel implements the stride=2 default"
    Ho, Wo = H // 2, W // 2

    vdw1, w1s, b1, dw2f, w2f, b2 = prepare_kernel_params(raw_params)
    Cout = w2f.shape[1]

    # Fuse the NCHW->NHWC layout change with stride-2 space-to-depth:
    # x_s2d[n, i, j, (2a+b)*C + c] = x[n, c, 2i+a, 2j+b].  One XLA copy
    # (the transpose we would need anyway) and a lane-dense 4*C channel axis.
    x_s2d = jnp.transpose(x_nchw.reshape(N, C, Ho, 2, Wo, 2),
                          (0, 2, 4, 3, 5, 1)).reshape(N, Ho, Wo, 4 * C)

    flops = 2 * N * Ho * Wo * (4 * C * C + C * Cout + 9 * C + 4 * 4 * C)
    bytes_accessed = 4 * (x_s2d.size + N * Ho * Wo * Cout
                          + w1s.size + w2f.size + vdw1.size + dw2f.size
                          + b1.size + b2.size)

    out_nhwc = pl.pallas_call(
        sepconv_kernel,
        out_shape=jax.ShapeDtypeStruct((N, Ho, Wo, Cout), jnp.float32),
        grid_spec=pltpu.PrefetchScalarGridSpec(
            num_scalar_prefetch=0,
            grid=(N,),                                   # parallel batch axis
            in_specs=[
                pl.BlockSpec((1, Ho, Wo, 4 * C), lambda n: (n, 0, 0, 0)),
                pl.BlockSpec((4, 4 * C), lambda n: (0, 0)),
                pl.BlockSpec((4 * C, C), lambda n: (0, 0)),
                pl.BlockSpec((1, C), lambda n: (0, 0)),
                pl.BlockSpec((9, C), lambda n: (0, 0)),
                pl.BlockSpec((C, Cout), lambda n: (0, 0)),
                pl.BlockSpec((1, Cout), lambda n: (0, 0)),
            ],
            out_specs=pl.BlockSpec((1, Ho, Wo, Cout), lambda n: (n, 0, 0, 0)),
            scratch_shapes=[
                pltpu.VMEM((1, Ho + 1, Wo + 1, 4 * C), jnp.float32),
                pltpu.VMEM((1, Ho + 2, Wo + 2, C), jnp.float32),
            ],
        ),
        compiler_params=pltpu.CompilerParams(
            dimension_semantics=("parallel",),
        ),
        cost_estimate=pl.CostEstimate(flops=flops, transcendentals=0,
                                      bytes_accessed=bytes_accessed),
    )(x_s2d, vdw1, w1s, b1, dw2f, w2f, b2)

    # Back to the PyTorch NCHW convention (elided in an NHWC end-to-end model).
    return jnp.transpose(out_nhwc, (0, 3, 1, 2))


def make_raw_params(key, C, Cout):
    """Deterministic synthetic parameters matching SepConv.__init__ shapes."""
    ks = jax.random.split(key, 12)
    dw1 = 0.3 * jax.random.normal(ks[0], (C, 1, 3, 3), jnp.float32)
    pw1 = 0.2 * jax.random.normal(ks[1], (C, C, 1, 1), jnp.float32)
    g1 = 1.0 + 0.1 * jax.random.normal(ks[2], (C,), jnp.float32)
    be1 = 0.1 * jax.random.normal(ks[3], (C,), jnp.float32)
    m1 = 0.1 * jax.random.normal(ks[4], (C,), jnp.float32)
    v1 = jnp.abs(jax.random.normal(ks[5], (C,), jnp.float32)) + 0.5
    dw2 = 0.3 * jax.random.normal(ks[6], (C, 1, 3, 3), jnp.float32)
    pw2 = 0.2 * jax.random.normal(ks[7], (Cout, C, 1, 1), jnp.float32)
    g2 = 1.0 + 0.1 * jax.random.normal(ks[8], (Cout,), jnp.float32)
    be2 = 0.1 * jax.random.normal(ks[9], (Cout,), jnp.float32)
    m2 = 0.1 * jax.random.normal(ks[10], (Cout,), jnp.float32)
    v2 = jnp.abs(jax.random.normal(ks[11], (Cout,), jnp.float32)) + 0.5
    return (dw1, pw1, g1, be1, m1, v1, dw2, pw2, g2, be2, m2, v2)


def sepconv_reference(x, raw, eps=1e-5):
    """Pure-JAX NCHW reference mirroring the PyTorch eval-mode forward."""
    (dw1, pw1, g1, be1, m1, v1, dw2, pw2, g2, be2, m2, v2) = raw

    def dwconv(h, w, stride):
        return lax.conv_general_dilated(h, w, (stride, stride), ((1, 1), (1, 1)),
                                        feature_group_count=h.shape[1],
                                        dimension_numbers=("NCHW", "OIHW", "NCHW"))

    def pwconv(h, w):
        return lax.conv_general_dilated(h, w, (1, 1), "VALID",
                                        dimension_numbers=("NCHW", "OIHW", "NCHW"))

    def bn(h, g, b, m, v):
        s = g / jnp.sqrt(v + eps)
        return h * s.reshape(1, -1, 1, 1) + (b - m * s).reshape(1, -1, 1, 1)

    h = dwconv(x, dw1, 2)
    h = pwconv(h, pw1)
    h = jax.nn.relu(bn(h, g1, be1, m1, v1))
    h = dwconv(h, dw2, 1)
    h = pwconv(h, pw2)
    h = jax.nn.relu(bn(h, g2, be2, m2, v2))
    return h


if __name__ == "__main__":
    C_in, C_out = 64, 128          # lane-dense output (Cout multiple of 128)
    N, H, W = 2, 16, 16

    key = jax.random.PRNGKey(0)
    kx, kp = jax.random.split(key)
    x = jax.random.normal(kx, (N, C_in, H, W), jnp.float32)
    raw = make_raw_params(kp, C_in, C_out)

    out = sepconv_pallas(x, raw)
    out = jax.block_until_ready(out)

    ref = sepconv_reference(x, raw)
    assert out.shape == (N, C_out, H // 2, W // 2)
    assert jnp.allclose(out, ref, atol=2e-3, rtol=2e-3), "mismatch vs reference"

    print("KERNEL_OK")
</pallas_src>

<mosaic_0001>
module attributes {stable_mosaic.version = 11 : i64} {
  func.func @sepconv_kernel(%arg0: i32, %arg1: memref<1x8x8x256xf32, #tpu.memory_space<vmem>>, %arg2: memref<4x256xf32, #tpu.memory_space<vmem>>, %arg3: memref<256x64xf32, #tpu.memory_space<vmem>>, %arg4: memref<1x64xf32, #tpu.memory_space<vmem>>, %arg5: memref<9x64xf32, #tpu.memory_space<vmem>>, %arg6: memref<64x128xf32, #tpu.memory_space<vmem>>, %arg7: memref<1x128xf32, #tpu.memory_space<vmem>>, %arg8: memref<1x8x8x128xf32, #tpu.memory_space<vmem>>, %arg9: memref<1x9x9x256xf32, #tpu.memory_space<vmem>>, %arg10: memref<1x10x10x64xf32, #tpu.memory_space<vmem>>) attributes {dimension_semantics = [#tpu.dimension_semantics<parallel>], iteration_bounds = array<i64: 2>, scalar_prefetch = 0 : i64, scratch_operands = 2 : i64, tpu.core_type = #tpu.core_type<tc>, window_params = [{transform_indices = @transform_0, window_bounds = array<i64: 1, 8, 8, 256>}, {pipeline_mode = #tpu.pipeline_mode<synchronous>, transform_indices = @transform_1, window_bounds = array<i64: 4, 256>}, {pipeline_mode = #tpu.pipeline_mode<synchronous>, transform_indices = @transform_2, window_bounds = array<i64: 256, 64>}, {pipeline_mode = #tpu.pipeline_mode<synchronous>, transform_indices = @transform_3, window_bounds = array<i64: 1, 64>}, {pipeline_mode = #tpu.pipeline_mode<synchronous>, transform_indices = @transform_4, window_bounds = array<i64: 9, 64>}, {pipeline_mode = #tpu.pipeline_mode<synchronous>, transform_indices = @transform_5, window_bounds = array<i64: 64, 128>}, {pipeline_mode = #tpu.pipeline_mode<synchronous>, transform_indices = @transform_6, window_bounds = array<i64: 1, 128>}, {transform_indices = @transform_7, window_bounds = array<i64: 1, 8, 8, 128>}]} {
    %cst = arith.constant 0.000000e+00 : f32
    %0 = vector.broadcast %cst : f32 to vector<1x1x9x256xf32>
    %c0 = arith.constant 0 : index
    %c0_0 = arith.constant 0 : index
    %c0_1 = arith.constant 0 : index
    %c0_2 = arith.constant 0 : index
    %1 = vector.load %arg9[%c0, %c0_0, %c0_1, %c0_2] : memref<1x9x9x256xf32, #tpu.memory_space<vmem>>, vector<1x1x9x256xf32>
    tpu.vector_store %arg9[%c0, %c0_0, %c0_1, %c0_2], %0 {strides = array<i32>} : memref<1x9x9x256xf32, #tpu.memory_space<vmem>>, vector<1x1x9x256xf32>,
    %cst_3 = arith.constant 0.000000e+00 : f32
    %2 = vector.broadcast %cst_3 : f32 to vector<1x8x1x256xf32>
    %c0_4 = arith.constant 0 : index
    %c1 = arith.constant 1 : index
    %c0_5 = arith.constant 0 : index
    %c0_6 = arith.constant 0 : index
    %3 = vector.load %arg9[%c0_4, %c1, %c0_5, %c0_6] : memref<1x9x9x256xf32, #tpu.memory_space<vmem>>, vector<1x8x1x256xf32>
    tpu.vector_store %arg9[%c0_4, %c1, %c0_5, %c0_6], %2 {strides = array<i32>} : memref<1x9x9x256xf32, #tpu.memory_space<vmem>>, vector<1x8x1x256xf32>,
    %c0_7 = arith.constant 0 : index
    %c0_8 = arith.constant 0 : index
    %c0_9 = arith.constant 0 : index
    %c0_10 = arith.constant 0 : index
    %4 = vector.load %arg1[%c0_7, %c0_8, %c0_9, %c0_10] : memref<1x8x8x256xf32, #tpu.memory_space<vmem>>, vector<1x8x8x256xf32>
    %c0_11 = arith.constant 0 : index
    %c1_12 = arith.constant 1 : index
    %c1_13 = arith.constant 1 : index
    %c0_14 = arith.constant 0 : index
    %5 = vector.load %arg9[%c0_11, %c1_12, %c1_13, %c0_14] : memref<1x9x9x256xf32, #tpu.memory_space<vmem>>, vector<1x8x8x256xf32>
    tpu.vector_store %arg9[%c0_11, %c1_12, %c1_13, %c0_14], %4 {strides = array<i32>} : memref<1x9x9x256xf32, #tpu.memory_space<vmem>>, vector<1x8x8x256xf32>,
    %c0_15 = arith.constant 0 : index
    %c0_16 = arith.constant 0 : index
    %c0_17 = arith.constant 0 : index
    %c0_18 = arith.constant 0 : index
    %6 = vector.load %arg9[%c0_15, %c0_16, %c0_17, %c0_18] : memref<1x9x9x256xf32, #tpu.memory_space<vmem>>, vector<1x8x8x256xf32>
    %c0_19 = arith.constant 0 : index
    %c0_20 = arith.constant 0 : index
    %7 = vector.load %arg2[%c0_19, %c0_20] : memref<4x256xf32, #tpu.memory_space<vmem>>, vector<1x256xf32>
    %8 = vector.shape_cast %7 : vector<1x256xf32> to vector<1x1x1x256xf32>
    %9 = vector.broadcast %8 : vector<1x1x1x256xf32> to vector<1x8x8x256xf32>
    %10 = arith.mulf %6, %9 : vector<1x8x8x256xf32>
    %c0_21 = arith.constant 0 : index
    %c0_22 = arith.constant 0 : index
    %c1_23 = arith.constant 1 : index
    %c0_24 = arith.constant 0 : index
    %11 = vector.load %arg9[%c0_21, %c0_22, %c1_23, %c0_24] : memref<1x9x9x256xf32, #tpu.memory_space<vmem>>, vector<1x8x8x256xf32>
    %c1_25 = arith.constant 1 : index
    %c0_26 = arith.constant 0 : index
    %12 = vector.load %arg2[%c1_25, %c0_26] : memref<4x256xf32, #tpu.memory_space<vmem>>, vector<1x256xf32>
    %13 = vector.shape_cast %12 : vector<1x256xf32> to vector<1x1x1x256xf32>
    %14 = vector.broadcast %13 : vector<1x1x1x256xf32> to vector<1x8x8x256xf32>
    %15 = arith.mulf %11, %14 : vector<1x8x8x256xf32>
    %16 = arith.addf %10, %15 : vector<1x8x8x256xf32>
    %c0_27 = arith.constant 0 : index
    %c1_28 = arith.constant 1 : index
    %c0_29 = arith.constant 0 : index
    %c0_30 = arith.constant 0 : index
    %17 = vector.load %arg9[%c0_27, %c1_28, %c0_29, %c0_30] : memref<1x9x9x256xf32, #tpu.memory_space<vmem>>, vector<1x8x8x256xf32>
    %c2 = arith.constant 2 : index
    %c0_31 = arith.constant 0 : index
    %18 = vector.load %arg2[%c2, %c0_31] : memref<4x256xf32, #tpu.memory_space<vmem>>, vector<1x256xf32>
    %19 = vector.shape_cast %18 : vector<1x256xf32> to vector<1x1x1x256xf32>
    %20 = vector.broadcast %19 : vector<1x1x1x256xf32> to vector<1x8x8x256xf32>
    %21 = arith.mulf %17, %20 : vector<1x8x8x256xf32>
    %22 = arith.addf %16, %21 : vector<1x8x8x256xf32>
    %c0_32 = arith.constant 0 : index
    %c1_33 = arith.constant 1 : index
    %c1_34 = arith.constant 1 : index
    %c0_35 = arith.constant 0 : index
    %23 = vector.load %arg9[%c0_32, %c1_33, %c1_34, %c0_35] : memref<1x9x9x256xf32, #tpu.memory_space<vmem>>, vector<1x8x8x256xf32>
    %c3 = arith.constant 3 : index
    %c0_36 = arith.constant 0 : index
    %24 = vector.load %arg2[%c3, %c0_36] : memref<4x256xf32, #tpu.memory_space<vmem>>, vector<1x256xf32>
    %25 = vector.shape_cast %24 : vector<1x256xf32> to vector<1x1x1x256xf32>
    %26 = vector.broadcast %25 : vector<1x1x1x256xf32> to vector<1x8x8x256xf32>
    %27 = arith.mulf %23, %26 : vector<1x8x8x256xf32>
    %28 = arith.addf %22, %27 : vector<1x8x8x256xf32>
    %29 = vector.shape_cast %28 : vector<1x8x8x256xf32> to vector<64x256xf32>
    %c0_37 = arith.constant 0 : index
    %c0_38 = arith.constant 0 : index
    %30 = vector.load %arg3[%c0_37, %c0_38] : memref<256x64xf32, #tpu.memory_space<vmem>>, vector<256x64xf32>
    %cst_39 = arith.constant dense<0.000000e+00> : vector<64x64xf32>
    %31 = tpu.matmul %29, %30, %cst_39 {dimension_numbers = #tpu.dot_dimension_numbers<[1], [0], [0], [1], [0, 0, 1, 1], [], []>} : vector<64x256xf32>, vector<256x64xf32>, vector<64x64xf32> -> vector<64x64xf32>
    %c0_40 = arith.constant 0 : index
    %c0_41 = arith.constant 0 : index
    %32 = vector.load %arg4[%c0_40, %c0_41] : memref<1x64xf32, #tpu.memory_space<vmem>>, vector<1x64xf32>
    %33 = vector.broadcast %32 : vector<1x64xf32> to vector<64x64xf32>
    %34 = arith.addf %31, %33 : vector<64x64xf32>
    %cst_42 = arith.constant 0.000000e+00 : f32
    %35 = vector.broadcast %cst_42 : f32 to vector<64x64xf32>
    %36 = arith.maximumf %34, %35 : vector<64x64xf32>
    %cst_43 = arith.constant 0.000000e+00 : f32
    %37 = vector.broadcast %cst_43 : f32 to vector<1x1x10x64xf32>
    %c0_44 = arith.constant 0 : index
    %c0_45 = arith.constant 0 : index
    %c0_46 = arith.constant 0 : index
    %c0_47 = arith.constant 0 : index
    %38 = vector.load %arg10[%c0_44, %c0_45, %c0_46, %c0_47] : memref<1x10x10x64xf32, #tpu.memory_space<vmem>>, vector<1x1x10x64xf32>
    tpu.vector_store %arg10[%c0_44, %c0_45, %c0_46, %c0_47], %37 {strides = array<i32>} : memref<1x10x10x64xf32, #tpu.memory_space<vmem>>, vector<1x1x10x64xf32>,
    %cst_48 = arith.constant 0.000000e+00 : f32
    %39 = vector.broadcast %cst_48 : f32 to vector<1x1x10x64xf32>
    %c0_49 = arith.constant 0 : index
    %c9 = arith.constant 9 : index
    %c0_50 = arith.constant 0 : index
    %c0_51 = arith.constant 0 : index
    %40 = vector.load %arg10[%c0_49, %c9, %c0_50, %c0_51] : memref<1x10x10x64xf32, #tpu.memory_space<vmem>>, vector<1x1x10x64xf32>
    tpu.vector_store %arg10[%c0_49, %c9, %c0_50, %c0_51], %39 {strides = array<i32>} : memref<1x10x10x64xf32, #tpu.memory_space<vmem>>, vector<1x1x10x64xf32>,
    %cst_52 = arith.constant 0.000000e+00 : f32
    %41 = vector.broadcast %cst_52 : f32 to vector<1x8x1x64xf32>
    %c0_53 = arith.constant 0 : index
    %c1_54 = arith.constant 1 : index
    %c0_55 = arith.constant 0 : index
    %c0_56 = arith.constant 0 : index
    %42 = vector.load %arg10[%c0_53, %c1_54, %c0_55, %c0_56] : memref<1x10x10x64xf32, #tpu.memory_space<vmem>>, vector<1x8x1x64xf32>
    tpu.vector_store %arg10[%c0_53, %c1_54, %c0_55, %c0_56], %41 {strides = array<i32>} : memref<1x10x10x64xf32, #tpu.memory_space<vmem>>, vector<1x8x1x64xf32>,
    %cst_57 = arith.constant 0.000000e+00 : f32
    %43 = vector.broadcast %cst_57 : f32 to vector<1x8x1x64xf32>
    %c0_58 = arith.constant 0 : index
    %c1_59 = arith.constant 1 : index
    %c9_60 = arith.constant 9 : index
    %c0_61 = arith.constant 0 : index
    %44 = vector.load %arg10[%c0_58, %c1_59, %c9_60, %c0_61] : memref<1x10x10x64xf32, #tpu.memory_space<vmem>>, vector<1x8x1x64xf32>
    tpu.vector_store %arg10[%c0_58, %c1_59, %c9_60, %c0_61], %43 {strides = array<i32>} : memref<1x10x10x64xf32, #tpu.memory_space<vmem>>, vector<1x8x1x64xf32>,
    %45 = vector.shape_cast %36 : vector<64x64xf32> to vector<1x8x8x64xf32>
    %c0_62 = arith.constant 0 : index
    %c1_63 = arith.constant 1 : index
    %c1_64 = arith.constant 1 : index
    %c0_65 = arith.constant 0 : index
    %46 = vector.load %arg10[%c0_62, %c1_63, %c1_64, %c0_65] : memref<1x10x10x64xf32, #tpu.memory_space<vmem>>, vector<1x8x8x64xf32>
    tpu.vector_store %arg10[%c0_62, %c1_63, %c1_64, %c0_65], %45 {strides = array<i32>} : memref<1x10x10x64xf32, #tpu.memory_space<vmem>>, vector<1x8x8x64xf32>,
    %c0_66 = arith.constant 0 : index
    %c0_67 = arith.constant 0 : index
    %c0_68 = arith.constant 0 : index
    %c0_69 = arith.constant 0 : index
    %47 = vector.load %arg10[%c0_66, %c0_67, %c0_68, %c0_69] : memref<1x10x10x64xf32, #tpu.memory_space<vmem>>, vector<1x8x8x64xf32>
    %c0_70 = arith.constant 0 : index
    %c0_71 = arith.constant 0 : index
    %48 = vector.load %arg5[%c0_70, %c0_71] : memref<9x64xf32, #tpu.memory_space<vmem>>, vector<1x64xf32>
    %49 = vector.shape_cast %48 : vector<1x64xf32> to vector<1x1x1x64xf32>
    %50 = vector.broadcast %49 : vector<1x1x1x64xf32> to vector<1x8x8x64xf32>
    %51 = arith.mulf %47, %50 : vector<1x8x8x64xf32>
    %c0_72 = arith.constant 0 : index
    %c0_73 = arith.constant 0 : index
    %c1_74 = arith.constant 1 : index
    %c0_75 = arith.constant 0 : index
    %52 = vector.load %arg10[%c0_72, %c0_73, %c1_74, %c0_75] : memref<1x10x10x64xf32, #tpu.memory_space<vmem>>, vector<1x8x8x64xf32>
    %c1_76 = arith.constant 1 : index
    %c0_77 = arith.constant 0 : index
    %53 = vector.load %arg5[%c1_76, %c0_77] : memref<9x64xf32, #tpu.memory_space<vmem>>, vector<1x64xf32>
    %54 = vector.shape_cast %53 : vector<1x64xf32> to vector<1x1x1x64xf32>
    %55 = vector.broadcast %54 : vector<1x1x1x64xf32> to vector<1x8x8x64xf32>
    %56 = arith.mulf %52, %55 : vector<1x8x8x64xf32>
    %57 = arith.addf %51, %56 : vector<1x8x8x64xf32>
    %c0_78 = arith.constant 0 : index
    %c0_79 = arith.constant 0 : index
    %c2_80 = arith.constant 2 : index
    %c0_81 = arith.constant 0 : index
    %58 = vector.load %arg10[%c0_78, %c0_79, %c2_80, %c0_81] : memref<1x10x10x64xf32, #tpu.memory_space<vmem>>, vector<1x8x8x64xf32>
    %c2_82 = arith.constant 2 : index
    %c0_83 = arith.constant 0 : index
    %59 = vector.load %arg5[%c2_82, %c0_83] : memref<9x64xf32, #tpu.memory_space<vmem>>, vector<1x64xf32>
    %60 = vector.shape_cast %59 : vector<1x64xf32> to vector<1x1x1x64xf32>
    %61 = vector.broadcast %60 : vector<1x1x1x64xf32> to vector<1x8x8x64xf32>
    %62 = arith.mulf %58, %61 : vector<1x8x8x64xf32>
    %63 = arith.addf %57, %62 : vector<1x8x8x64xf32>
    %c0_84 = arith.constant 0 : index
    %c1_85 = arith.constant 1 : index
    %c0_86 = arith.constant 0 : index
    %c0_87 = arith.constant 0 : index
    %64 = vector.load %arg10[%c0_84, %c1_85, %c0_86, %c0_87] : memref<1x10x10x64xf32, #tpu.memory_space<vmem>>, vector<1x8x8x64xf32>
    %c3_88 = arith.constant 3 : index
    %c0_89 = arith.constant 0 : index
    %65 = vector.load %arg5[%c3_88, %c0_89] : memref<9x64xf32, #tpu.memory_space<vmem>>, vector<1x64xf32>
    %66 = vector.shape_cast %65 : vector<1x64xf32> to vector<1x1x1x64xf32>
    %67 = vector.broadcast %66 : vector<1x1x1x64xf32> to vector<1x8x8x64xf32>
    %68 = arith.mulf %64, %67 : vector<1x8x8x64xf32>
    %69 = arith.addf %63, %68 : vector<1x8x8x64xf32>
    %c0_90 = arith.constant 0 : index
    %c1_91 = arith.constant 1 : index
    %c1_92 = arith.constant 1 : index
    %c0_93 = arith.constant 0 : index
    %70 = vector.load %arg10[%c0_90, %c1_91, %c1_92, %c0_93] : memref<1x10x10x64xf32, #tpu.memory_space<vmem>>, vector<1x8x8x64xf32>
    %c4 = arith.constant 4 : index
    %c0_94 = arith.constant 0 : index
    %71 = vector.load %arg5[%c4, %c0_94] : memref<9x64xf32, #tpu.memory_space<vmem>>, vector<1x64xf32>
    %72 = vector.shape_cast %71 : vector<1x64xf32> to vector<1x1x1x64xf32>
    %73 = vector.broadcast %72 : vector<1x1x1x64xf32> to vector<1x8x8x64xf32>
    %74 = arith.mulf %70, %73 : vector<1x8x8x64xf32>
    %75 = arith.addf %69, %74 : vector<1x8x8x64xf32>
    %c0_95 = arith.constant 0 : index
    %c1_96 = arith.constant 1 : index
    %c2_97 = arith.constant 2 : index
    %c0_98 = arith.constant 0 : index
    %76 = vector.load %arg10[%c0_95, %c1_96, %c2_97, %c0_98] : memref<1x10x10x64xf32, #tpu.memory_space<vmem>>, vector<1x8x8x64xf32>
    %c5 = arith.constant 5 : index
    %c0_99 = arith.constant 0 : index
    %77 = vector.load %arg5[%c5, %c0_99] : memref<9x64xf32, #tpu.memory_space<vmem>>, vector<1x64xf32>
    %78 = vector.shape_cast %77 : vector<1x64xf32> to vector<1x1x1x64xf32>
    %79 = vector.broadcast %78 : vector<1x1x1x64xf32> to vector<1x8x8x64xf32>
    %80 = arith.mulf %76, %79 : vector<1x8x8x64xf32>
    %81 = arith.addf %75, %80 : vector<1x8x8x64xf32>
    %c0_100 = arith.constant 0 : index
    %c2_101 = arith.constant 2 : index
    %c0_102 = arith.constant 0 : index
    %c0_103 = arith.constant 0 : index
    %82 = vector.load %arg10[%c0_100, %c2_101, %c0_102, %c0_103] : memref<1x10x10x64xf32, #tpu.memory_space<vmem>>, vector<1x8x8x64xf32>
    %c6 = arith.constant 6 : index
    %c0_104 = arith.constant 0 : index
    %83 = vector.load %arg5[%c6, %c0_104] : memref<9x64xf32, #tpu.memory_space<vmem>>, vector<1x64xf32>
    %84 = vector.shape_cast %83 : vector<1x64xf32> to vector<1x1x1x64xf32>
    %85 = vector.broadcast %84 : vector<1x1x1x64xf32> to vector<1x8x8x64xf32>
    %86 = arith.mulf %82, %85 : vector<1x8x8x64xf32>
    %87 = arith.addf %81, %86 : vector<1x8x8x64xf32>
    %c0_105 = arith.constant 0 : index
    %c2_106 = arith.constant 2 : index
    %c1_107 = arith.constant 1 : index
    %c0_108 = arith.constant 0 : index
    %88 = vector.load %arg10[%c0_105, %c2_106, %c1_107, %c0_108] : memref<1x10x10x64xf32, #tpu.memory_space<vmem>>, vector<1x8x8x64xf32>
    %c7 = arith.constant 7 : index
    %c0_109 = arith.constant 0 : index
    %89 = vector.load %arg5[%c7, %c0_109] : memref<9x64xf32, #tpu.memory_space<vmem>>, vector<1x64xf32>
    %90 = vector.shape_cast %89 : vector<1x64xf32> to vector<1x1x1x64xf32>
    %91 = vector.broadcast %90 : vector<1x1x1x64xf32> to vector<1x8x8x64xf32>
    %92 = arith.mulf %88, %91 : vector<1x8x8x64xf32>
    %93 = arith.addf %87, %92 : vector<1x8x8x64xf32>
    %c0_110 = arith.constant 0 : index
    %c2_111 = arith.constant 2 : index
    %c2_112 = arith.constant 2 : index
    %c0_113 = arith.constant 0 : index
    %94 = vector.load %arg10[%c0_110, %c2_111, %c2_112, %c0_113] : memref<1x10x10x64xf32, #tpu.memory_space<vmem>>, vector<1x8x8x64xf32>
    %c8 = arith.constant 8 : index
    %c0_114 = arith.constant 0 : index
    %95 = vector.load %arg5[%c8, %c0_114] : memref<9x64xf32, #tpu.memory_space<vmem>>, vector<1x64xf32>
    %96 = vector.shape_cast %95 : vector<1x64xf32> to vector<1x1x1x64xf32>
    %97 = vector.broadcast %96 : vector<1x1x1x64xf32> to vector<1x8x8x64xf32>
    %98 = arith.mulf %94, %97 : vector<1x8x8x64xf32>
    %99 = arith.addf %93, %98 : vector<1x8x8x64xf32>
    %100 = vector.shape_cast %99 : vector<1x8x8x64xf32> to vector<64x64xf32>
    %c0_115 = arith.constant 0 : index
    %c0_116 = arith.constant 0 : index
    %101 = vector.load %arg6[%c0_115, %c0_116] : memref<64x128xf32, #tpu.memory_space<vmem>>, vector<64x128xf32>
    %cst_117 = arith.constant dense<0.000000e+00> : vector<64x128xf32>
    %102 = tpu.matmul %100, %101, %cst_117 {dimension_numbers = #tpu.dot_dimension_numbers<[1], [0], [0], [1], [0, 0, 1, 1], [], []>} : vector<64x64xf32>, vector<64x128xf32>, vector<64x128xf32> -> vector<64x128xf32>
    %c0_118 = arith.constant 0 : index
    %c0_119 = arith.constant 0 : index
    %103 = vector.load %arg7[%c0_118, %c0_119] : memref<1x128xf32, #tpu.memory_space<vmem>>, vector<1x128xf32>
    %104 = vector.broadcast %103 : vector<1x128xf32> to vector<64x128xf32>
    %105 = arith.addf %102, %104 : vector<64x128xf32>
    %cst_120 = arith.constant 0.000000e+00 : f32
    %106 = vector.broadcast %cst_120 : f32 to vector<64x128xf32>
    %107 = arith.maximumf %105, %106 : vector<64x128xf32>
    %108 = vector.shape_cast %107 : vector<64x128xf32> to vector<1x8x8x128xf32>
    %c0_121 = arith.constant 0 : index
    %c0_122 = arith.constant 0 : index
    %c0_123 = arith.constant 0 : index
    %c0_124 = arith.constant 0 : index
    %109 = vector.load %arg8[%c0_121, %c0_122, %c0_123, %c0_124] : memref<1x8x8x128xf32, #tpu.memory_space<vmem>>, vector<1x8x8x128xf32>
    tpu.vector_store %arg8[%c0_121, %c0_122, %c0_123, %c0_124], %108 {strides = array<i32>} : memref<1x8x8x128xf32, #tpu.memory_space<vmem>>, vector<1x8x8x128xf32>,
    return
  }
  func.func @transform_0(%arg0: i32) -> (i32, i32, i32, i32) {
    %c0_i32 = arith.constant 0 : i32
    %c0_i32_0 = arith.constant 0 : i32
    %c0_i32_1 = arith.constant 0 : i32
    %c0_i32_2 = arith.constant 0 : i32
    return %arg0, %c0_i32, %c0_i32_0, %c0_i32_1 : i32, i32, i32, i32
  }
  func.func @transform_1(%arg0: i32) -> (i32, i32) {
    %c0_i32 = arith.constant 0 : i32
    %c0_i32_0 = arith.constant 0 : i32
    %c0_i32_1 = arith.constant 0 : i32
    return %c0_i32, %c0_i32_0 : i32, i32
  }
  func.func @transform_2(%arg0: i32) -> (i32, i32) {
    %c0_i32 = arith.constant 0 : i32
    %c0_i32_0 = arith.constant 0 : i32
    %c0_i32_1 = arith.constant 0 : i32
    return %c0_i32, %c0_i32_0 : i32, i32
  }
  func.func @transform_3(%arg0: i32) -> (i32, i32) {
    %c0_i32 = arith.constant 0 : i32
    %c0_i32_0 = arith.constant 0 : i32
    %c0_i32_1 = arith.constant 0 : i32
    return %c0_i32, %c0_i32_0 : i32, i32
  }
  func.func @transform_4(%arg0: i32) -> (i32, i32) {
    %c0_i32 = arith.constant 0 : i32
    %c0_i32_0 = arith.constant 0 : i32
    %c0_i32_1 = arith.constant 0 : i32
    return %c0_i32, %c0_i32_0 : i32, i32
  }
  func.func @transform_5(%arg0: i32) -> (i32, i32) {
    %c0_i32 = arith.constant 0 : i32
    %c0_i32_0 = arith.constant 0 : i32
    %c0_i32_1 = arith.constant 0 : i32
    return %c0_i32, %c0_i32_0 : i32, i32
  }
  func.func @transform_6(%arg0: i32) -> (i32, i32) {
    %c0_i32 = arith.constant 0 : i32
    %c0_i32_0 = arith.constant 0 : i32
    %c0_i32_1 = arith.constant 0 : i32
    return %c0_i32, %c0_i32_0 : i32, i32
  }
  func.func @transform_7(%arg0: i32) -> (i32, i32, i32, i32) {
    %c0_i32 = arith.constant 0 : i32
    %c0_i32_0 = arith.constant 0 : i32
    %c0_i32_1 = arith.constant 0 : i32
    %c0_i32_2 = arith.constant 0 : i32
    return %arg0, %c0_i32, %c0_i32_0, %c0_i32_1 : i32, i32, i32, i32
  }
}

</mosaic_0001>

<llo_original>
// kernel: tpu_custom_call.1
$region0: #{tpu_custom_call.1}
  #allocation0 [shape = 'u32[]', space=smem, size = 0x4, offset = 0x4, fixed_abs, tag = 'smem constant byte address 0x4 - core index']
  #allocation1 [shape = 'u32[72,128]{1,0:T(1,128)}', space=vmem, size = 0x9000, scoped, tag = 'internal scratch']
  #allocation2 [shape = 'f32[1,9,9,256]{3,2,1,0:T(8,128)}', space=vmem, size = 0x24000, scoped, tag = 'scratch operand']
  #allocation3 [shape = 'f32[1,10,10,64]{3,2,1,0:T(8,128)}', space=vmem, size = 0x14000, scoped, tag = 'scratch operand']
  %s0 = inlined_call_operand.vmem [shape: f32[2,8,8,256], index: 0, kind: input, shape index: {}]
  %s1 = inlined_call_operand.vmem [shape: f32[4,256], index: 1, kind: input, shape index: {}]
  %s2 = inlined_call_operand.vmem [shape: f32[256,64], index: 2, kind: input, shape index: {}]
  %s3 = inlined_call_operand.vmem [shape: f32[1,64], index: 3, kind: input, shape index: {}]
  %s4 = inlined_call_operand.vmem [shape: f32[9,64], index: 4, kind: input, shape index: {}]
  %s5 = inlined_call_operand.vmem [shape: f32[64,128], index: 5, kind: input, shape index: {}]
  %s6 = inlined_call_operand.vmem [shape: f32[1,128], index: 6, kind: input, shape index: {}]
  %s7 = inlined_call_operand.hbm [shape: f32[2,8,8,128], index: 7, kind: output, shape index: {}]
  %s8 = sld [smem:[#allocation0]]
  $region61: #{tpu_custom_call.1} parent=0
    _
  %s10 = ssub.s32 1, %s8
  %s11 = scalar_select 0, %s10, %s8
  $region1: #{tpu_custom_call.1} parent=0
    #allocation4 [shape = 'u8[65536]{0}', space=vmem, size = 0x10000, scoped, tag = 'output window, operand 0']
    #allocation5 [shape = 's32[2]{0}', space=sflag, size = 0x8, scoped, tag = 'scoped memory for tpu_custom_call.1']
    %12 = vsyncpa [#allocation5], 0
    %s13 = scalar_lea.sflag [#allocation5], 1
    %14 = vsyncpa %s13, 0
    loop: start=0, step=1, limit=4
    $region2: #{tpu_custom_call.1} parent=1 // loop_pre_header
      _
    $region3: #{tpu_custom_call.1} parent=1 // loop_header
      %s16 = sphi 0, %s20
      %p17 = scmp.ge.s32.totalorder %s16, 4
      %s26 = sphi 0, %s28
      %s29 = sphi 0, %s26
      %s30 = sphi 0, %s29
      %s46 = sphi 0, %s30
      %s50 = sphi 0, %s50
      %s52 = sphi 0, %s50
      %s53 = sphi 0, %s52
      %s67 = sphi 0, %s53
      %s71 = sphi 0, %s71
      %s73 = sphi 0, %s71
      %s74 = sphi 0, %s73
      %s88 = sphi 0, %s74
      %s92 = sphi 0, %s92
      %s94 = sphi 0, %s92
      %s95 = sphi 0, %s94
      %s109 = sphi 0, %s95
      %s113 = sphi 0, %s113
      %s115 = sphi 0, %s113
      %s116 = sphi 0, %s115
      %s130 = sphi 0, %s116
      %s134 = sphi 0, %s134
      %s136 = sphi 0, %s134
      %s137 = sphi 0, %s136
      %s151 = sphi 0, %s137
      %s155 = sphi 0, %s155
      %s157 = sphi 0, %s155
      %s158 = sphi 0, %s157
      %s172 = sphi 0, %s158
      %s178 = sphi 0, %s180
      %s181 = sphi 0, %s178
      %s182 = sphi 0, %s181
      %s198 = sphi 0, %s182
    $region4: #{tpu_custom_call.1} parent=1 // loop_header_branch
      %19 = sbr.rel (%p17) target = $region8
    $region5: #{tpu_custom_call.1} parent=1 // loop_body
      %s21 = ssub.s32 %s16, 1
      %s22 = ssub.s32 %s16, 2
      %s23 = sadd.s32 %s16, 1
      %s24 = ssub.s32 %s16, %s23
      %p25 = scmp.eq.s32.totalorder %s24, 0
      %s27 = sadd.s32 %s26, 1
      %s28 = scalar_select %p25, %s26, %s27
      %p31 = pneg %p25
      %p32 = scmp.eq.s32.totalorder %s16, 1
      %p33 = por %p31, %p32
      %p34 = scmp.ne.s32.totalorder %s26, %s29
      %p35 = scmp.eq.s32.totalorder %s16, 0
      %p36 = por %p34, %p35
      %p37 = scmp.ne.s32.totalorder %s26, %s29
      %p38 = scmp.eq.s32.totalorder %s21, 1
      %p39 = por %p37, %p38
      %p40 = scmp.ne.s32.totalorder %s29, %s30
      %p41 = scmp.eq.s32.totalorder %s21, 0
      %p42 = por %p40, %p41
      %p43 = scmp.ne.s32.totalorder %s29, %s30
      %p44 = scmp.eq.s32.totalorder %s22, 1
      %p45 = por %p43, %p44
      %p47 = scmp.ne.s32.totalorder %s30, %s46
      %p48 = scmp.eq.s32.totalorder %s22, 0
      %p49 = por %p47, %p48
      %s51 = sadd.s32 %s50, 1
      %p54 = scmp.eq.s32.totalorder %s16, 1
      %p55 = scmp.ne.s32.totalorder %s50, %s52
      %p56 = scmp.eq.s32.totalorder %s16, 0
      %p57 = por %p55, %p56
      %p58 = scmp.ne.s32.totalorder %s50, %s52
      %p59 = scmp.eq.s32.totalorder %s21, 1
      %p60 = por %p58, %p59
      %p61 = scmp.ne.s32.totalorder %s52, %s53
      %p62 = scmp.eq.s32.totalorder %s21, 0
      %p63 = por %p61, %p62
      %p64 = scmp.ne.s32.totalorder %s52, %s53
      %p65 = scmp.eq.s32.totalorder %s22, 1
      %p66 = por %p64, %p65
      %p68 = scmp.ne.s32.totalorder %s53, %s67
      %p69 = scmp.eq.s32.totalorder %s22, 0
      %p70 = por %p68, %p69
      %s72 = sadd.s32 %s71, 1
      %p75 = scmp.eq.s32.totalorder %s16, 1
      %p76 = scmp.ne.s32.totalorder %s71, %s73
      %p77 = scmp.eq.s32.totalorder %s16, 0
      %p78 = por %p76, %p77
      %p79 = scmp.ne.s32.totalorder %s71, %s73
      %p80 = scmp.eq.s32.totalorder %s21, 1
      %p81 = por %p79, %p80
      %p82 = scmp.ne.s32.totalorder %s73, %s74
      %p83 = scmp.eq.s32.totalorder %s21, 0
      %p84 = por %p82, %p83
      %p85 = scmp.ne.s32.totalorder %s73, %s74
      %p86 = scmp.eq.s32.totalorder %s22, 1
      %p87 = por %p85, %p86
      %p89 = scmp.ne.s32.totalorder %s74, %s88
      %p90 = scmp.eq.s32.totalorder %s22, 0
      %p91 = por %p89, %p90
      %s93 = sadd.s32 %s92, 1
      %p96 = scmp.eq.s32.totalorder %s16, 1
      %p97 = scmp.ne.s32.totalorder %s92, %s94
      %p98 = scmp.eq.s32.totalorder %s16, 0
      %p99 = por %p97, %p98
      %p100 = scmp.ne.s32.totalorder %s92, %s94
      %p101 = scmp.eq.s32.totalorder %s21, 1
      %p102 = por %p100, %p101
      %p103 = scmp.ne.s32.totalorder %s94, %s95
      %p104 = scmp.eq.s32.totalorder %s21, 0
      %p105 = por %p103, %p104
      %p106 = scmp.ne.s32.totalorder %s94, %s95
      %p107 = scmp.eq.s32.totalorder %s22, 1
      %p108 = por %p106, %p107
      %p110 = scmp.ne.s32.totalorder %s95, %s109
      %p111 = scmp.eq.s32.totalorder %s22, 0
      %p112 = por %p110, %p111
      %s114 = sadd.s32 %s113, 1
      %p117 = scmp.eq.s32.totalorder %s16, 1
      %p118 = scmp.ne.s32.totalorder %s113, %s115
      %p119 = scmp.eq.s32.totalorder %s16, 0
      %p120 = por %p118, %p119
      %p121 = scmp.ne.s32.totalorder %s113, %s115
      %p122 = scmp.eq.s32.totalorder %s21, 1
      %p123 = por %p121, %p122
      %p124 = scmp.ne.s32.totalorder %s115, %s116
      %p125 = scmp.eq.s32.totalorder %s21, 0
      %p126 = por %p124, %p125
      %p127 = scmp.ne.s32.totalorder %s115, %s116
      %p128 = scmp.eq.s32.totalorder %s22, 1
      %p129 = por %p127, %p128
      %p131 = scmp.ne.s32.totalorder %s116, %s130
      %p132 = scmp.eq.s32.totalorder %s22, 0
      %p133 = por %p131, %p132
      %s135 = sadd.s32 %s134, 1
      %p138 = scmp.eq.s32.totalorder %s16, 1
      %p139 = scmp.ne.s32.totalorder %s134, %s136
      %p140 = scmp.eq.s32.totalorder %s16, 0
      %p141 = por %p139, %p140
      %p142 = scmp.ne.s32.totalorder %s134, %s136
      %p143 = scmp.eq.s32.totalorder %s21, 1
      %p144 = por %p142, %p143
      %p145 = scmp.ne.s32.totalorder %s136, %s137
      %p146 = scmp.eq.s32.totalorder %s21, 0
      %p147 = por %p145, %p146
      %p148 = scmp.ne.s32.totalorder %s136, %s137
      %p149 = scmp.eq.s32.totalorder %s22, 1
      %p150 = por %p148, %p149
      %p152 = scmp.ne.s32.totalorder %s137, %s151
      %p153 = scmp.eq.s32.totalorder %s22, 0
      %p154 = por %p152, %p153
      %s156 = sadd.s32 %s155, 1
      %p159 = scmp.eq.s32.totalorder %s16, 1
      %p160 = scmp.ne.s32.totalorder %s155, %s157
      %p161 = scmp.eq.s32.totalorder %s16, 0
      %p162 = por %p160, %p161
      %p163 = scmp.ne.s32.totalorder %s155, %s157
      %p164 = scmp.eq.s32.totalorder %s21, 1
      %p165 = por %p163, %p164
      %p166 = scmp.ne.s32.totalorder %s157, %s158
      %p167 = scmp.eq.s32.totalorder %s21, 0
      %p168 = por %p166, %p167
      %p169 = scmp.ne.s32.totalorder %s157, %s158
      %p170 = scmp.eq.s32.totalorder %s22, 1
      %p171 = por %p169, %p170
      %p173 = scmp.ne.s32.totalorder %s158, %s172
      %p174 = scmp.eq.s32.totalorder %s22, 0
      %p175 = por %p173, %p174
      %s176 = ssub.s32 %s16, %s23
      %p177 = scmp.eq.s32.totalorder %s176, 0
      %s179 = sadd.s32 %s178, 1
      %s180 = scalar_select %p177, %s178, %s179
      %p183 = pneg %p177
      %p184 = scmp.eq.s32.totalorder %s16, 1
      %p185 = por %p183, %p184
      %p186 = scmp.ne.s32.totalorder %s178, %s181
      %p187 = scmp.eq.s32.totalorder %s16, 0
      %p188 = por %p186, %p187
      %p189 = scmp.ne.s32.totalorder %s178, %s181
      %p190 = scmp.eq.s32.totalorder %s21, 1
      %p191 = por %p189, %p190
      %p192 = scmp.ne.s32.totalorder %s181, %s182
      %p193 = scmp.eq.s32.totalorder %s21, 0
      %p194 = por %p192, %p193
      %p195 = scmp.ne.s32.totalorder %s181, %s182
      %p196 = scmp.eq.s32.totalorder %s22, 1
      %p197 = por %p195, %p196
      %p199 = scmp.ne.s32.totalorder %s182, %s198
      %p200 = scmp.eq.s32.totalorder %s22, 0
      %p201 = por %p199, %p200
      %p202 = scmp.le.s32.totalorder 1, %s16
      %p203 = scmp.lt.s32.totalorder %s16, 3
      %p204 = pnand %p202, %p203
      %p205 = pneg %p204
      // Predicated region
      $region9: #{tpu_custom_call.1} parent=5 // pred_check
        _
      $region10: #{tpu_custom_call.1} parent=5 // pred_check_branch
        %207 = sbr.rel (%p204) target = $region12
      $region11: #{tpu_custom_call.1} parent=5 // pred_region
        %s208 = ssub.s32 %s16, 1
        // Predicated region
        $region13: #{tpu_custom_call.1} parent=11 // pred_check
          %p209 = pneg %p63
        $region14: #{tpu_custom_call.1} parent=11 // pred_check_branch
          %211 = sbr.rel (%p209) target = $region16
        $region15: #{tpu_custom_call.1} parent=11 // pred_region
          _
        $region16: #{tpu_custom_call.1} parent=11 // pred_fallthru
          _
        // Predicated region
        $region17: #{tpu_custom_call.1} parent=11 // pred_check
          %p212 = pneg %p84
        $region18: #{tpu_custom_call.1} parent=11 // pred_check_branch
          %214 = sbr.rel (%p212) target = $region20
        $region19: #{tpu_custom_call.1} parent=11 // pred_region
          _
        $region20: #{tpu_custom_call.1} parent=11 // pred_fallthru
          _
        // Predicated region
        $region21: #{tpu_custom_call.1} parent=11 // pred_check
          %p215 = pneg %p105
        $region22: #{tpu_custom_call.1} parent=11 // pred_check_branch
          %217 = sbr.rel (%p215) target = $region24
        $region23: #{tpu_custom_call.1} parent=11 // pred_region
          _
        $region24: #{tpu_custom_call.1} parent=11 // pred_fallthru
          _
        // Predicated region
        $region25: #{tpu_custom_call.1} parent=11 // pred_check
          %p218 = pneg %p126
        $region26: #{tpu_custom_call.1} parent=11 // pred_check_branch
          %220 = sbr.rel (%p218) target = $region28
        $region27: #{tpu_custom_call.1} parent=11 // pred_region
          _
        $region28: #{tpu_custom_call.1} parent=11 // pred_fallthru
          _
        // Predicated region
        $region29: #{tpu_custom_call.1} parent=11 // pred_check
          %p221 = pneg %p147
        $region30: #{tpu_custom_call.1} parent=11 // pred_check_branch
          %223 = sbr.rel (%p221) target = $region32
        $region31: #{tpu_custom_call.1} parent=11 // pred_region
          _
        $region32: #{tpu_custom_call.1} parent=11 // pred_fallthru
          _
        // Predicated region
        $region33: #{tpu_custom_call.1} parent=11 // pred_check
          %p224 = pneg %p168
        $region34: #{tpu_custom_call.1} parent=11 // pred_check_branch
          %226 = sbr.rel (%p224) target = $region36
        $region35: #{tpu_custom_call.1} parent=11 // pred_region
          _
        $region36: #{tpu_custom_call.1} parent=11 // pred_fallthru
          _
      $region12: #{tpu_custom_call.1} parent=5 // pred_fallthru
        _
      %p227 = scmp.lt.s32.totalorder %s16, 2
      // Predicated region
      $region37: #{tpu_custom_call.1} parent=5 // pred_check
        %p228 = pneg %p227
      $region38: #{tpu_custom_call.1} parent=5 // pred_check_branch
        %230 = sbr.rel (%p228) target = $region40
      $region39: #{tpu_custom_call.1} parent=5 // pred_region
        // Predicated region
        $region41: #{tpu_custom_call.1} parent=39 // pred_check
          %p231 = pneg %p36
        $region42: #{tpu_custom_call.1} parent=39 // pred_check_branch
          %233 = sbr.rel (%p231) target = $region44
        $region43: #{tpu_custom_call.1} parent=39 // pred_region
          %p234 = scmp.lt.s32.totalorder %s16, 1
          %s235 = scalar_select %p234, %s16, 1
          %s236 = smul.addr %s235, 16
          %s237 = smul.addr %s236, 8
          %s238 = scalar_lea.vmem %s0, %s237
        $region44: #{tpu_custom_call.1} parent=39 // pred_fallthru
          _
      $region40: #{tpu_custom_call.1} parent=5 // pred_fallthru
        _
      %p239 = scmp.le.s32.totalorder 1, %s16
      %p240 = scmp.lt.s32.totalorder %s16, 3
      %p241 = pnand %p239, %p240
      %p242 = pneg %p241
      // Predicated region
      $region45: #{tpu_custom_call.1} parent=5 // pred_check
        _
      $region46: #{tpu_custom_call.1} parent=5 // pred_check_branch
        %244 = sbr.rel (%p241) target = $region48
      $region47: #{tpu_custom_call.1} parent=5 // pred_region
        %s245 = ssub.s32 %s16, 1
        %p246 = scmp.lt.s32.totalorder %s21, 1
        %s247 = scalar_select %p246, %s21, 1
        %s248 = smul.addr %s247, 16
        %s249 = smul.addr %s248, 8
        %s250 = scalar_lea.vmem %s0, %s249
        %p251 = pneg %p42
        %p252 = pneg %p39
        %p253 = pneg %p63
        %p254 = pneg %p60
        %p255 = pneg %p84
        %p256 = pneg %p81
        %p257 = pneg %p105
        %p258 = pneg %p102
        %p259 = pneg %p126
        %p260 = pneg %p123
        %p261 = pneg %p147
        %p262 = pneg %p144
        %p263 = pneg %p168
        %p264 = pneg %p165
        %p265 = pneg %p194
        %p266 = pneg %p191
        %s267 = sand.u32 %s181, 1
        %s268 = scalar_lea.sflag [#allocation5], %s267
        %s269 = sand.u32 %s181, 1
        %s270 = smul.addr %s269, 64
        %s271 = scalar_lea.vmem [#allocation4], %s270
        %p272 = scmp.lt.s32.totalorder %s21, 1
        %s273 = scalar_select %p272, %s21, 1
        %s274 = smul.addr %s273, 16
        %s275 = smul.addr %s274, 8
        %s276 = scalar_lea.vmem %s0, %s275
        %277 = vst [vmem:[#allocation2] sm:$0xff] 0.0
        %278 = vst [vmem:[#allocation2 + $0x8] sm:$0xff] 0.0
        %279 = vst [vmem:[#allocation2 + $0x10] sm:$0x1] 0.0
        %280 = vst [vmem:[#allocation2 + $0x18] sm:$0x1] 0.0
        %s281 = scalar_lea.vmem [#allocation2], 32
        %v282 = vlaneseq
        %vm283 = vcmp.ge.s32.totalorder %v282, 0
        %vm284 = vcmp.lt.s32.totalorder %v282, 256
        %vm285 = vmand %vm283, %vm284
        %286 = vst.msk [vmem:[%s281] ss:$8 sm:$0x3] %vm285, 0.0
        %287 = vst.msk [vmem:[%s281] ss:$8 sm:$0x0] %vm285, 0.0
        %s288 = scalar_lea.vmem %s281, 32 [#allocation2]
        %289 = vst.msk [vmem:[%s288] ss:$8 sm:$0x3] %vm285, 0.0
        %290 = vst.msk [vmem:[%s288] ss:$8 sm:$0x0] %vm285, 0.0
        %s291 = scalar_lea.vmem %s281, 64 [#allocation2]
        %292 = vst.msk [vmem:[%s291] ss:$8 sm:$0x3] %vm285, 0.0
        %293 = vst.msk [vmem:[%s291] ss:$8 sm:$0x0] %vm285, 0.0
        %s294 = scalar_lea.vmem %s281, 96 [#allocation2]
        %295 = vst.msk [vmem:[%s294] ss:$8 sm:$0x3] %vm285, 0.0
        %296 = vst.msk [vmem:[%s294] ss:$8 sm:$0x0] %vm285, 0.0
        %s297 = scalar_lea.vmem %s281, 128 [#allocation2]
        %298 = vst.msk [vmem:[%s297] ss:$8 sm:$0x3] %vm285, 0.0
        %299 = vst.msk [vmem:[%s297] ss:$8 sm:$0x0] %vm285, 0.0
        %s300 = scalar_lea.vmem %s281, 160 [#allocation2]
        %301 = vst.msk [vmem:[%s300] ss:$8 sm:$0x3] %vm285, 0.0
        %302 = vst.msk [vmem:[%s300] ss:$8 sm:$0x0] %vm285, 0.0
        %s303 = scalar_lea.vmem %s281, 192 [#allocation2]
        %304 = vst.msk [vmem:[%s303] ss:$8 sm:$0x3] %vm285, 0.0
        %305 = vst.msk [vmem:[%s303] ss:$8 sm:$0x0] %vm285, 0.0
        %s306 = scalar_lea.vmem %s281, 224 [#allocation2]
        %307 = vst.msk [vmem:[%s306] ss:$8 sm:$0x3] %vm285, 0.0
        %308 = vst.msk [vmem:[%s306] ss:$8 sm:$0x0] %vm285, 0.0
        %v309 = vld [vmem:[%s276] sm:$0xff]
        %v310 = vld [vmem:[%s276 + $0x8] sm:$0xff]
        %v311 = vld [vmem:[%s276 + $0x10] sm:$0xff]
        %v312 = vld [vmem:[%s276 + $0x18] sm:$0xff]
        %v313 = vld [vmem:[%s276 + $0x20] sm:$0xff]
        %v314 = vld [vmem:[%s276 + $0x28] sm:$0xff]
        %v315 = vld [vmem:[%s276 + $0x30] sm:$0xff]
        %v316 = vld [vmem:[%s276 + $0x38] sm:$0xff]
        %v317 = vld [vmem:[%s276 + $0x40] sm:$0xff]
        %v318 = vld [vmem:[%s276 + $0x48] sm:$0xff]
        %v319 = vld [vmem:[%s276 + $0x50] sm:$0xff]
        %v320 = vld [vmem:[%s276 + $0x58] sm:$0xff]
        %v321 = vld [vmem:[%s276 + $0x60] sm:$0xff]
        %v322 = vld [vmem:[%s276 + $0x68] sm:$0xff]
        %v323 = vld [vmem:[%s276 + $0x70] sm:$0xff]
        %v324 = vld [vmem:[%s276 + $0x78] sm:$0xff]
        %v341 = vrot.slane %v309, 7
        %v342 = vrot.slane %v310, 7
        %v343 = vrot.slane %v311, 7
        %v344 = vrot.slane %v312, 7
        %v345 = vrot.slane %v313, 7
        %v346 = vrot.slane %v314, 7
        %v347 = vrot.slane %v315, 7
        %v348 = vrot.slane %v316, 7
        %v349 = vrot.slane %v317, 7
        %v350 = vrot.slane %v318, 7
        %v351 = vrot.slane %v319, 7
        %v352 = vrot.slane %v320, 7
        %v353 = vrot.slane %v321, 7
        %v354 = vrot.slane %v322, 7
        %v355 = vrot.slane %v323, 7
        %v356 = vrot.slane %v324, 7
        %373 = vst [vmem:[%s281] sm:$0xfe] %v341
        %374 = vst [vmem:[%s281 + $0x8] sm:$0xfe] %v342
        %375 = vst [vmem:[%s281 + $0x10] sm:$0x1] %v341
        %376 = vst [vmem:[%s281 + $0x18] sm:$0x1] %v342
        %377 = vst [vmem:[%s281 + $0x20] sm:$0xfe] %v343
        %378 = vst [vmem:[%s281 + $0x28] sm:$0xfe] %v344
        %379 = vst [vmem:[%s281 + $0x30] sm:$0x1] %v343
        %380 = vst [vmem:[%s281 + $0x38] sm:$0x1] %v344
        %381 = vst [vmem:[%s281 + $0x40] sm:$0xfe] %v345
        %382 = vst [vmem:[%s281 + $0x48] sm:$0xfe] %v346
        %383 = vst [vmem:[%s281 + $0x50] sm:$0x1] %v345
        %384 = vst [vmem:[%s281 + $0x58] sm:$0x1] %v346
        %385 = vst [vmem:[%s281 + $0x60] sm:$0xfe] %v347
        %386 = vst [vmem:[%s281 + $0x68] sm:$0xfe] %v348
        %387 = vst [vmem:[%s281 + $0x70] sm:$0x1] %v347
        %388 = vst [vmem:[%s281 + $0x78] sm:$0x1] %v348
        %389 = vst [vmem:[%s281 + $0x80] sm:$0xfe] %v349
        %390 = vst [vmem:[%s281 + $0x88] sm:$0xfe] %v350
        %391 = vst [vmem:[%s281 + $0x90] sm:$0x1] %v349
        %392 = vst [vmem:[%s281 + $0x98] sm:$0x1] %v350
        %393 = vst [vmem:[%s281 + $0xa0] sm:$0xfe] %v351
        %394 = vst [vmem:[%s281 + $0xa8] sm:$0xfe] %v352
        %395 = vst [vmem:[%s281 + $0xb0] sm:$0x1] %v351
        %396 = vst [vmem:[%s281 + $0xb8] sm:$0x1] %v352
        %397 = vst [vmem:[%s281 + $0xc0] sm:$0xfe] %v353
        %398 = vst [vmem:[%s281 + $0xc8] sm:$0xfe] %v354
        %399 = vst [vmem:[%s281 + $0xd0] sm:$0x1] %v353
        %400 = vst [vmem:[%s281 + $0xd8] sm:$0x1] %v354
        %401 = vst [vmem:[%s281 + $0xe0] sm:$0xfe] %v355
        %402 = vst [vmem:[%s281 + $0xe8] sm:$0xfe] %v356
        %403 = vst [vmem:[%s281 + $0xf0] sm:$0x1] %v355
        %404 = vst [vmem:[%s281 + $0xf8] sm:$0x1] %v356
        %v405 = vld [vmem:[#allocation2] sm:$0xff]
        %v406 = vld [vmem:[#allocation2 + $0x8] sm:$0xff]
        %v407 = vld [vmem:[#allocation2 + $0x20] sm:$0xff]
        %v408 = vld [vmem:[#allocation2 + $0x28] sm:$0xff]
        %v409 = vld [vmem:[#allocation2 + $0x40] sm:$0xff]
        %v410 = vld [vmem:[#allocation2 + $0x48] sm:$0xff]
        %v411 = vld [vmem:[#allocation2 + $0x60] sm:$0xff]
        %v412 = vld [vmem:[#allocation2 + $0x68] sm:$0xff]
        %v413 = vld [vmem:[#allocation2 + $0x80] sm:$0xff]
        %v414 = vld [vmem:[#allocation2 + $0x88] sm:$0xff]
        %v415 = vld [vmem:[#allocation2 + $0xa0] sm:$0xff]
        %v416 = vld [vmem:[#allocation2 + $0xa8] sm:$0xff]
        %v417 = vld [vmem:[#allocation2 + $0xc0] sm:$0xff]
        %v418 = vld [vmem:[#allocation2 + $0xc8] sm:$0xff]
        %v419 = vld [vmem:[#allocation2 + $0xe0] sm:$0xff]
        %v420 = vld [vmem:[#allocation2 + $0xe8] sm:$0xff]
        %v421 = vld [vmem:[%s1] ss:$4 sm:$0x3]
        %v423 = vperm.slane %v421, 0
        %v424 = vperm.slane %v421, 1
        %v427 = vmul.f32 %v405, %v423
        %v428 = vmul.f32 %v406, %v424
        %v429 = vmul.f32 %v407, %v423
        %v430 = vmul.f32 %v408, %v424
        %v431 = vmul.f32 %v409, %v423
        %v432 = vmul.f32 %v410, %v424
        %v433 = vmul.f32 %v411, %v423
        %v434 = vmul.f32 %v412, %v424
        %v435 = vmul.f32 %v413, %v423
        %v436 = vmul.f32 %v414, %v424
        %v437 = vmul.f32 %v415, %v423
        %v438 = vmul.f32 %v416, %v424
        %v439 = vmul.f32 %v417, %v423
        %v440 = vmul.f32 %v418, %v424
        %v441 = vmul.f32 %v419, %v423
        %v442 = vmul.f32 %v420, %v424
        %v443 = vld [vmem:[#allocation2] sm:$0xfe]
        %v444 = vld [vmem:[#allocation2 + $0x8] sm:$0xfe]
        %v445 = vld [vmem:[#allocation2 + $0x10] sm:$0x1]
        %v446 = vld [vmem:[#allocation2 + $0x18] sm:$0x1]
        %v447 = vld [vmem:[#allocation2 + $0x20] sm:$0xfe]
        %v448 = vld [vmem:[#allocation2 + $0x28] sm:$0xfe]
        %v449 = vld [vmem:[#allocation2 + $0x30] sm:$0x1]
        %v450 = vld [vmem:[#allocation2 + $0x38] sm:$0x1]
        %v451 = vld [vmem:[#allocation2 + $0x40] sm:$0xfe]
        %v452 = vld [vmem:[#allocation2 + $0x48] sm:$0xfe]
        %v453 = vld [vmem:[#allocation2 + $0x50] sm:$0x1]
        %v454 = vld [vmem:[#allocation2 + $0x58] sm:$0x1]
        %v455 = vld [vmem:[#allocation2 + $0x60] sm:$0xfe]
        %v456 = vld [vmem:[#allocation2 + $0x68] sm:$0xfe]
        %v457 = vld [vmem:[#allocation2 + $0x70] sm:$0x1]
        %v458 = vld [vmem:[#allocation2 + $0x78] sm:$0x1]
        %v459 = vld [vmem:[#allocation2 + $0x80] sm:$0xfe]
        %v460 = vld [vmem:[#allocation2 + $0x88] sm:$0xfe]
        %v461 = vld [vmem:[#allocation2 + $0x90] sm:$0x1]
        %v462 = vld [vmem:[#allocation2 + $0x98] sm:$0x1]
        %v463 = vld [vmem:[#allocation2 + $0xa0] sm:$0xfe]
        %v464 = vld [vmem:[#allocation2 + $0xa8] sm:$0xfe]
        %v465 = vld [vmem:[#allocation2 + $0xb0] sm:$0x1]
        %v466 = vld [vmem:[#allocation2 + $0xb8] sm:$0x1]
        %v467 = vld [vmem:[#allocation2 + $0xc0] sm:$0xfe]
        %v468 = vld [vmem:[#allocation2 + $0xc8] sm:$0xfe]
        %v469 = vld [vmem:[#allocation2 + $0xd0] sm:$0x1]
        %v470 = vld [vmem:[#allocation2 + $0xd8] sm:$0x1]
        %v471 = vld [vmem:[#allocation2 + $0xe0] sm:$0xfe]
        %v472 = vld [vmem:[#allocation2 + $0xe8] sm:$0xfe]
        %v473 = vld [vmem:[#allocation2 + $0xf0] sm:$0x1]
        %v474 = vld [vmem:[#allocation2 + $0xf8] sm:$0x1]
        %s475 = scalar_lea.vmem %s1, 1
        %v476 = vld [vmem:[%s475] ss:$4 sm:$0x3]
        %v478 = vperm.slane %v476, 0
        %v479 = vperm.slane %v476, 1
        %v482 = vmul.f32 %v443, %v478
        %v483 = vmul.f32 %v444, %v479
        %v484 = vmul.f32 %v445, %v478
        %v485 = vmul.f32 %v446, %v479
        %v486 = vmul.f32 %v447, %v478
        %v487 = vmul.f32 %v448, %v479
        %v488 = vmul.f32 %v449, %v478
        %v489 = vmul.f32 %v450, %v479
        %v490 = vmul.f32 %v451, %v478
        %v491 = vmul.f32 %v452, %v479
        %v492 = vmul.f32 %v453, %v478
        %v493 = vmul.f32 %v454, %v479
        %v494 = vmul.f32 %v455, %v478
        %v495 = vmul.f32 %v456, %v479
        %v496 = vmul.f32 %v457, %v478
        %v497 = vmul.f32 %v458, %v479
        %v498 = vmul.f32 %v459, %v478
        %v499 = vmul.f32 %v460, %v479
        %v500 = vmul.f32 %v461, %v478
        %v501 = vmul.f32 %v462, %v479
        %v502 = vmul.f32 %v463, %v478
        %v503 = vmul.f32 %v464, %v479
        %v504 = vmul.f32 %v465, %v478
        %v505 = vmul.f32 %v466, %v479
        %v506 = vmul.f32 %v467, %v478
        %v507 = vmul.f32 %v468, %v479
        %v508 = vmul.f32 %v469, %v478
        %v509 = vmul.f32 %v470, %v479
        %v510 = vmul.f32 %v471, %v478
        %v511 = vmul.f32 %v472, %v479
        %v512 = vmul.f32 %v473, %v478
        %v513 = vmul.f32 %v474, %v479
        %vm546 = vcmask 1046528
        %v547 = vrot.slane %v482, 1
        %v548 = vrot.slane %v484, 1
        %v549 = vsel %vm546, %v547, %v548
        %v550 = vrot.slane %v483, 1
        %v551 = vrot.slane %v485, 1
        %v552 = vsel %vm546, %v550, %v551
        %v553 = vrot.slane %v486, 1
        %v554 = vrot.slane %v488, 1
        %v555 = vsel %vm546, %v553, %v554
        %v556 = vrot.slane %v487, 1
        %v557 = vrot.slane %v489, 1
        %v558 = vsel %vm546, %v556, %v557
        %v559 = vrot.slane %v490, 1
        %v560 = vrot.slane %v492, 1
        %v561 = vsel %vm546, %v559, %v560
        %v562 = vrot.slane %v491, 1
        %v563 = vrot.slane %v493, 1
        %v564 = vsel %vm546, %v562, %v563
        %v565 = vrot.slane %v494, 1
        %v566 = vrot.slane %v496, 1
        %v567 = vsel %vm546, %v565, %v566
        %v568 = vrot.slane %v495, 1
        %v569 = vrot.slane %v497, 1
        %v570 = vsel %vm546, %v568, %v569
        %v571 = vrot.slane %v498, 1
        %v572 = vrot.slane %v500, 1
        %v573 = vsel %vm546, %v571, %v572
        %v574 = vrot.slane %v499, 1
        %v575 = vrot.slane %v501, 1
        %v576 = vsel %vm546, %v574, %v575
        %v577 = vrot.slane %v502, 1
        %v578 = vrot.slane %v504, 1
        %v579 = vsel %vm546, %v577, %v578
        %v580 = vrot.slane %v503, 1
        %v581 = vrot.slane %v505, 1
        %v582 = vsel %vm546, %v580, %v581
        %v583 = vrot.slane %v506, 1
        %v584 = vrot.slane %v508, 1
        %v585 = vsel %vm546, %v583, %v584
        %v586 = vrot.slane %v507, 1
        %v587 = vrot.slane %v509, 1
        %v588 = vsel %vm546, %v586, %v587
        %v589 = vrot.slane %v510, 1
        %v590 = vrot.slane %v512, 1
        %v591 = vsel %vm546, %v589, %v590
        %v592 = vrot.slane %v511, 1
        %v593 = vrot.slane %v513, 1
        %v594 = vsel %vm546, %v592, %v593
        %v611 = vadd.f32 %v427, %v549
        %v612 = vadd.f32 %v428, %v552
        %v613 = vadd.f32 %v429, %v555
        %v614 = vadd.f32 %v430, %v558
        %v615 = vadd.f32 %v431, %v561
        %v616 = vadd.f32 %v432, %v564
        %v617 = vadd.f32 %v433, %v567
        %v618 = vadd.f32 %v434, %v570
        %v619 = vadd.f32 %v435, %v573
        %v620 = vadd.f32 %v436, %v576
        %v621 = vadd.f32 %v437, %v579
        %v622 = vadd.f32 %v438, %v582
        %v623 = vadd.f32 %v439, %v585
        %v624 = vadd.f32 %v440, %v588
        %v625 = vadd.f32 %v441, %v591
        %v626 = vadd.f32 %v442, %v594
        %v627 = vld [vmem:[%s281] sm:$0xff]
        %v628 = vld [vmem:[%s281 + $0x8] sm:$0xff]
        %v629 = vld [vmem:[%s281 + $0x20] sm:$0xff]
        %v630 = vld [vmem:[%s281 + $0x28] sm:$0xff]
        %v631 = vld [vmem:[%s281 + $0x40] sm:$0xff]
        %v632 = vld [vmem:[%s281 + $0x48] sm:$0xff]
        %v633 = vld [vmem:[%s281 + $0x60] sm:$0xff]
        %v634 = vld [vmem:[%s281 + $0x68] sm:$0xff]
        %v635 = vld [vmem:[%s281 + $0x80] sm:$0xff]
        %v636 = vld [vmem:[%s281 + $0x88] sm:$0xff]
        %v637 = vld [vmem:[%s281 + $0xa0] sm:$0xff]
        %v638 = vld [vmem:[%s281 + $0xa8] sm:$0xff]
        %v639 = vld [vmem:[%s281 + $0xc0] sm:$0xff]
        %v640 = vld [vmem:[%s281 + $0xc8] sm:$0xff]
        %v641 = vld [vmem:[%s281 + $0xe0] sm:$0xff]
        %v642 = vld [vmem:[%s281 + $0xe8] sm:$0xff]
        %s643 = scalar_lea.vmem %s1, 2
        %v644 = vld [vmem:[%s643] ss:$4 sm:$0x3]
        %v646 = vperm.slane %v644, 0
        %v647 = vperm.slane %v644, 1
        %v650 = vmul.f32 %v627, %v646
        %v651 = vmul.f32 %v628, %v647
        %v652 = vmul.f32 %v629, %v646
        %v653 = vmul.f32 %v630, %v647
        %v654 = vmul.f32 %v631, %v646
        %v655 = vmul.f32 %v632, %v647
        %v656 = vmul.f32 %v633, %v646
        %v657 = vmul.f32 %v634, %v647
        %v658 = vmul.f32 %v635, %v646
        %v659 = vmul.f32 %v636, %v647
        %v660 = vmul.f32 %v637, %v646
        %v661 = vmul.f32 %v638, %v647
        %v662 = vmul.f32 %v639, %v646
        %v663 = vmul.f32 %v640, %v647
        %v664 = vmul.f32 %v641, %v646
        %v665 = vmul.f32 %v642, %v647
        %v666 = vadd.f32 %v611, %v650
        %v667 = vadd.f32 %v612, %v651
        %v668 = vadd.f32 %v613, %v652
        %v669 = vadd.f32 %v614, %v653
        %v670 = vadd.f32 %v615, %v654
        %v671 = vadd.f32 %v616, %v655
        %v672 = vadd.f32 %v617, %v656
        %v673 = vadd.f32 %v618, %v657
        %v674 = vadd.f32 %v619, %v658
        %v675 = vadd.f32 %v620, %v659
        %v676 = vadd.f32 %v621, %v660
        %v677 = vadd.f32 %v622, %v661
        %v678 = vadd.f32 %v623, %v662
        %v679 = vadd.f32 %v624, %v663
        %v680 = vadd.f32 %v625, %v664
        %v681 = vadd.f32 %v626, %v665
        %v682 = vld [vmem:[%s281] sm:$0xfe]
        %v683 = vld [vmem:[%s281 + $0x8] sm:$0xfe]
        %v684 = vld [vmem:[%s281 + $0x10] sm:$0x1]
        %v685 = vld [vmem:[%s281 + $0x18] sm:$0x1]
        %v686 = vld [vmem:[%s281 + $0x20] sm:$0xfe]
        %v687 = vld [vmem:[%s281 + $0x28] sm:$0xfe]
        %v688 = vld [vmem:[%s281 + $0x30] sm:$0x1]
        %v689 = vld [vmem:[%s281 + $0x38] sm:$0x1]
        %v690 = vld [vmem:[%s281 + $0x40] sm:$0xfe]
        %v691 = vld [vmem:[%s281 + $0x48] sm:$0xfe]
        %v692 = vld [vmem:[%s281 + $0x50] sm:$0x1]
        %v693 = vld [vmem:[%s281 + $0x58] sm:$0x1]
        %v694 = vld [vmem:[%s281 + $0x60] sm:$0xfe]
        %v695 = vld [vmem:[%s281 + $0x68] sm:$0xfe]
        %v696 = vld [vmem:[%s281 + $0x70] sm:$0x1]
        %v697 = vld [vmem:[%s281 + $0x78] sm:$0x1]
        %v698 = vld [vmem:[%s281 + $0x80] sm:$0xfe]
        %v699 = vld [vmem:[%s281 + $0x88] sm:$0xfe]
        %v700 = vld [vmem:[%s281 + $0x90] sm:$0x1]
        %v701 = vld [vmem:[%s281 + $0x98] sm:$0x1]
        %v702 = vld [vmem:[%s281 + $0xa0] sm:$0xfe]
        %v703 = vld [vmem:[%s281 + $0xa8] sm:$0xfe]
        %v704 = vld [vmem:[%s281 + $0xb0] sm:$0x1]
        %v705 = vld [vmem:[%s281 + $0xb8] sm:$0x1]
        %v706 = vld [vmem:[%s281 + $0xc0] sm:$0xfe]
        %v707 = vld [vmem:[%s281 + $0xc8] sm:$0xfe]
        %v708 = vld [vmem:[%s281 + $0xd0] sm:$0x1]
        %v709 = vld [vmem:[%s281 + $0xd8] sm:$0x1]
        %v710 = vld [vmem:[%s281 + $0xe0] sm:$0xfe]
        %v711 = vld [vmem:[%s281 + $0xe8] sm:$0xfe]
        %v712 = vld [vmem:[%s281 + $0xf0] sm:$0x1]
        %v713 = vld [vmem:[%s281 + $0xf8] sm:$0x1]
        %s714 = scalar_lea.vmem %s1, 3
        %v715 = vld [vmem:[%s714] ss:$4 sm:$0x3]
        %v717 = vperm.slane %v715, 0
        %v718 = vperm.slane %v715, 1
        %v721 = vmul.f32 %v682, %v717
        %v722 = vmul.f32 %v683, %v718
        %v723 = vmul.f32 %v684, %v717
        %v724 = vmul.f32 %v685, %v718
        %v725 = vmul.f32 %v686, %v717
        %v726 = vmul.f32 %v687, %v718
        %v727 = vmul.f32 %v688, %v717
        %v728 = vmul.f32 %v689, %v718
        %v729 = vmul.f32 %v690, %v717
        %v730 = vmul.f32 %v691, %v718
        %v731 = vmul.f32 %v692, %v717
        %v732 = vmul.f32 %v693, %v718
        %v733 = vmul.f32 %v694, %v717
        %v734 = vmul.f32 %v695, %v718
        %v735 = vmul.f32 %v696, %v717
        %v736 = vmul.f32 %v697, %v718
        %v737 = vmul.f32 %v698, %v717
        %v738 = vmul.f32 %v699, %v718
        %v739 = vmul.f32 %v700, %v717
        %v740 = vmul.f32 %v701, %v718
        %v741 = vmul.f32 %v702, %v717
        %v742 = vmul.f32 %v703, %v718
        %v743 = vmul.f32 %v704, %v717
        %v744 = vmul.f32 %v705, %v718
        %v745 = vmul.f32 %v706, %v717
        %v746 = vmul.f32 %v707, %v718
        %v747 = vmul.f32 %v708, %v717
        %v748 = vmul.f32 %v709, %v718
        %v749 = vmul.f32 %v710, %v717
        %v750 = vmul.f32 %v711, %v718
        %v751 = vmul.f32 %v712, %v717
        %v752 = vmul.f32 %v713, %v718
        %v785 = vrot.slane %v721, 1
        %v786 = vrot.slane %v723, 1
        %v787 = vsel %vm546, %v785, %v786
        %v788 = vrot.slane %v722, 1
        %v789 = vrot.slane %v724, 1
        %v790 = vsel %vm546, %v788, %v789
        %v791 = vrot.slane %v725, 1
        %v792 = vrot.slane %v727, 1
        %v793 = vsel %vm546, %v791, %v792
        %v794 = vrot.slane %v726, 1
        %v795 = vrot.slane %v728, 1
        %v796 = vsel %vm546, %v794, %v795
        %v797 = vrot.slane %v729, 1
        %v798 = vrot.slane %v731, 1
        %v799 = vsel %vm546, %v797, %v798
        %v800 = vrot.slane %v730, 1
        %v801 = vrot.slane %v732, 1
        %v802 = vsel %vm546, %v800, %v801
        %v803 = vrot.slane %v733, 1
        %v804 = vrot.slane %v735, 1
        %v805 = vsel %vm546, %v803, %v804
        %v806 = vrot.slane %v734, 1
        %v807 = vrot.slane %v736, 1
        %v808 = vsel %vm546, %v806, %v807
        %v809 = vrot.slane %v737, 1
        %v810 = vrot.slane %v739, 1
        %v811 = vsel %vm546, %v809, %v810
        %v812 = vrot.slane %v738, 1
        %v813 = vrot.slane %v740, 1
        %v814 = vsel %vm546, %v812, %v813
        %v815 = vrot.slane %v741, 1
        %v816 = vrot.slane %v743, 1
        %v817 = vsel %vm546, %v815, %v816
        %v818 = vrot.slane %v742, 1
        %v819 = vrot.slane %v744, 1
        %v820 = vsel %vm546, %v818, %v819
        %v821 = vrot.slane %v745, 1
        %v822 = vrot.slane %v747, 1
        %v823 = vsel %vm546, %v821, %v822
        %v824 = vrot.slane %v746, 1
        %v825 = vrot.slane %v748, 1
        %v826 = vsel %vm546, %v824, %v825
        %v827 = vrot.slane %v749, 1
        %v828 = vrot.slane %v751, 1
        %v829 = vsel %vm546, %v827, %v828
        %v830 = vrot.slane %v750, 1
        %v831 = vrot.slane %v752, 1
        %v832 = vsel %vm546, %v830, %v831
        %v849 = vadd.f32 %v666, %v787
        %v850 = vadd.f32 %v667, %v790
        %v851 = vadd.f32 %v668, %v793
        %v852 = vadd.f32 %v669, %v796
        %v853 = vadd.f32 %v670, %v799
        %v854 = vadd.f32 %v671, %v802
        %v855 = vadd.f32 %v672, %v805
        %v856 = vadd.f32 %v673, %v808
        %v857 = vadd.f32 %v674, %v811
        %v858 = vadd.f32 %v675, %v814
        %v859 = vadd.f32 %v676, %v817
        %v860 = vadd.f32 %v677, %v820
        %v861 = vadd.f32 %v678, %v823
        %v862 = vadd.f32 %v679, %v826
        %v863 = vadd.f32 %v680, %v829
        %v864 = vadd.f32 %v681, %v832
        %v865 = vld [vmem:[%s2] sm:$0xff]
        %v866 = vld [vmem:[%s2 + $0x8] sm:$0xff]
        %v867 = vld [vmem:[%s2 + $0x10] sm:$0xff]
        %v868 = vld [vmem:[%s2 + $0x18] sm:$0xff]
        %v869 = vld [vmem:[%s2 + $0x20] sm:$0xff]
        %v870 = vld [vmem:[%s2 + $0x28] sm:$0xff]
        %v871 = vld [vmem:[%s2 + $0x30] sm:$0xff]
        %v872 = vld [vmem:[%s2 + $0x38] sm:$0xff]
        %v873 = vld [vmem:[%s2 + $0x40] sm:$0xff]
        %v874 = vld [vmem:[%s2 + $0x48] sm:$0xff]
        %v875 = vld [vmem:[%s2 + $0x50] sm:$0xff]
        %v876 = vld [vmem:[%s2 + $0x58] sm:$0xff]
        %v877 = vld [vmem:[%s2 + $0x60] sm:$0xff]
        %v878 = vld [vmem:[%s2 + $0x68] sm:$0xff]
        %v879 = vld [vmem:[%s2 + $0x70] sm:$0xff]
        %v880 = vld [vmem:[%s2 + $0x78] sm:$0xff]
        %v881 = vld [vmem:[%s2 + $0x80] sm:$0xff]
        %v882 = vld [vmem:[%s2 + $0x88] sm:$0xff]
        %v883 = vld [vmem:[%s2 + $0x90] sm:$0xff]
        %v884 = vld [vmem:[%s2 + $0x98] sm:$0xff]
        %v885 = vld [vmem:[%s2 + $0xa0] sm:$0xff]
        %v886 = vld [vmem:[%s2 + $0xa8] sm:$0xff]
        %v887 = vld [vmem:[%s2 + $0xb0] sm:$0xff]
        %v888 = vld [vmem:[%s2 + $0xb8] sm:$0xff]
        %v889 = vld [vmem:[%s2 + $0xc0] sm:$0xff]
        %v890 = vld [vmem:[%s2 + $0xc8] sm:$0xff]
        %v891 = vld [vmem:[%s2 + $0xd0] sm:$0xff]
        %v892 = vld [vmem:[%s2 + $0xd8] sm:$0xff]
        %v893 = vld [vmem:[%s2 + $0xe0] sm:$0xff]
        %v894 = vld [vmem:[%s2 + $0xe8] sm:$0xff]
        %v895 = vld [vmem:[%s2 + $0xf0] sm:$0xff]
        %v896 = vld [vmem:[%s2 + $0xf8] sm:$0xff]
        %v897 = vld [vmem:[%s3] sm:$0x1]
        %v899 = vperm.slane %v897, 0
        %901 = vmatpush.msra.mxu0 %v880
        %902 = vmatpush.msra.mxu0 %v879
        %903 = vmatpush.msra.mxu0 %v878
        %904 = vmatpush.msra.mxu0 %v877
        %905 = vmatpush.msra.mxu0 %v876
        %906 = vmatpush.msra.mxu0 %v875
        %907 = vmatpush.msra.mxu0 %v874
        %908 = vmatpush.msra.mxu0 %v873
        %909 = vmatpush.msra.mxu0 %v872
        %910 = vmatpush.msra.mxu0 %v871
        %911 = vmatpush.msra.mxu0 %v870
        %912 = vmatpush.msra.mxu0 %v869
        %913 = vmatpush.msra.mxu0 %v868
        %914 = vmatpush.msra.mxu0 %v867
        %915 = vmatpush.msra.mxu0 %v866
        %916 = vmatpush.msra.mxu0 %v865
        %917 = vmatmul.f32.gmra.mxu0 %v849
        %v918 = vpop.f32.mrf.mxu0
        %v919 = vadd.f32 %v899, %v918
        %920 = vmatmul.f32.gmra.mxu0 %v851
        %v921 = vpop.f32.mrf.mxu0
        %v922 = vadd.f32 %v899, %v921
        %923 = vmatmul.f32.gmra.mxu0 %v853
        %v924 = vpop.f32.mrf.mxu0
        %v925 = vadd.f32 %v899, %v924
        %926 = vmatmul.f32.gmra.mxu0 %v855
        %v927 = vpop.f32.mrf.mxu0
        %v928 = vadd.f32 %v899, %v927
        %929 = vmatmul.f32.gmra.mxu0 %v857
        %v930 = vpop.f32.mrf.mxu0
        %v931 = vadd.f32 %v899, %v930
        %932 = vmatmul.f32.gmra.mxu0 %v859
        %v933 = vpop.f32.mrf.mxu0
        %v934 = vadd.f32 %v899, %v933
        %935 = vmatmul.f32.gmra.mxu0 %v861
        %v936 = vpop.f32.mrf.mxu0
        %v937 = vadd.f32 %v899, %v936
        %938 = vmatmul.f32.gmra.mxu0 %v863
        %v939 = vpop.f32.mrf.mxu0
        %v940 = vadd.f32 %v899, %v939
        %941 = vdwg.mxu0
        %942 = vmatpush.msra.mxu0 %v896
        %943 = vmatpush.msra.mxu0 %v895
        %944 = vmatpush.msra.mxu0 %v894
        %945 = vmatpush.msra.mxu0 %v893
        %946 = vmatpush.msra.mxu0 %v892
        %947 = vmatpush.msra.mxu0 %v891
        %948 = vmatpush.msra.mxu0 %v890
        %949 = vmatpush.msra.mxu0 %v889
        %950 = vmatpush.msra.mxu0 %v888
        %951 = vmatpush.msra.mxu0 %v887
        %952 = vmatpush.msra.mxu0 %v886
        %953 = vmatpush.msra.mxu0 %v885
        %954 = vmatpush.msra.mxu0 %v884
        %955 = vmatpush.msra.mxu0 %v883
        %956 = vmatpush.msra.mxu0 %v882
        %957 = vmatpush.msra.mxu0 %v881
        %958 = vmatmul.f32.gmra.mxu0 %v850
        %v959 = vpop.f32.mrf.mxu0
        %v960 = vadd.f32 %v919, %v959
        %961 = vmatmul.f32.gmra.mxu0 %v852
        %v962 = vpop.f32.mrf.mxu0
        %v963 = vadd.f32 %v922, %v962
        %964 = vmatmul.f32.gmra.mxu0 %v854
        %v965 = vpop.f32.mrf.mxu0
        %v966 = vadd.f32 %v925, %v965
        %967 = vmatmul.f32.gmra.mxu0 %v856
        %v968 = vpop.f32.mrf.mxu0
        %v969 = vadd.f32 %v928, %v968
        %970 = vmatmul.f32.gmra.mxu0 %v858
        %v971 = vpop.f32.mrf.mxu0
        %v972 = vadd.f32 %v931, %v971
        %973 = vmatmul.f32.gmra.mxu0 %v860
        %v974 = vpop.f32.mrf.mxu0
        %v975 = vadd.f32 %v934, %v974
        %976 = vmatmul.f32.gmra.mxu0 %v862
        %v977 = vpop.f32.mrf.mxu0
        %v978 = vadd.f32 %v937, %v977
        %979 = vmatmul.f32.gmra.mxu0 %v864
        %v980 = vpop.f32.mrf.mxu0
        %v981 = vadd.f32 %v940, %v980
        %982 = vdwg.mxu0
        %v983 = vmax.f32 %v960, 0.0
        %v984 = vmax.f32 %v963, 0.0
        %v985 = vmax.f32 %v966, 0.0
        %v986 = vmax.f32 %v969, 0.0
        %v987 = vmax.f32 %v972, 0.0
        %v988 = vmax.f32 %v975, 0.0
        %v989 = vmax.f32 %v978, 0.0
        %v990 = vmax.f32 %v981, 0.0
        %vm991 = vcmask 523264
        %992 = vst.msk [vmem:[#allocation3] sm:$0xff] %vm991, 0.0
        %vm993 = vcmask 517120
        %994 = vst.msk [vmem:[#allocation3 + $0x8] sm:$0x3] %vm993, 0.0
        %s995 = scalar_lea.vmem [#allocation3], 144
        %996 = vst.msk [vmem:[%s995] sm:$0xff] %vm991, 0.0
        %997 = vst.msk [vmem:[%s995 + $0x8] sm:$0x3] %vm993, 0.0
        %s998 = scalar_lea.vmem [#allocation3], 16
        %vm999 = vcmask 516096
        %1000 = vst.msk [vmem:[%s998] sm:$0x1] %vm999, 0.0
        %1001 = vst.msk [vmem:[%s998 + $0x10] sm:$0x1] %vm999, 0.0
        %1002 = vst.msk [vmem:[%s998 + $0x20] sm:$0x1] %vm999, 0.0
        %1003 = vst.msk [vmem:[%s998 + $0x30] sm:$0x1] %vm999, 0.0
        %1004 = vst.msk [vmem:[%s998 + $0x40] sm:$0x1] %vm999, 0.0
        %1005 = vst.msk [vmem:[%s998 + $0x50] sm:$0x1] %vm999, 0.0
        %1006 = vst.msk [vmem:[%s998 + $0x60] sm:$0x1] %vm999, 0.0
        %1007 = vst.msk [vmem:[%s998 + $0x70] sm:$0x1] %vm999, 0.0
        %1008 = vst.msk [vmem:[%s998 + $0x9] sm:$0x1] %vm999, 0.0
        %1009 = vst.msk [vmem:[%s998 + $0x19] sm:$0x1] %vm999, 0.0
        %1010 = vst.msk [vmem:[%s998 + $0x29] sm:$0x1] %vm999, 0.0
        %1011 = vst.msk [vmem:[%s998 + $0x39] sm:$0x1] %vm999, 0.0
        %1012 = vst.msk [vmem:[%s998 + $0x49] sm:$0x1] %vm999, 0.0
        %1013 = vst.msk [vmem:[%s998 + $0x59] sm:$0x1] %vm999, 0.0
        %1014 = vst.msk [vmem:[%s998 + $0x69] sm:$0x1] %vm999, 0.0
        %1015 = vst.msk [vmem:[%s998 + $0x79] sm:$0x1] %vm999, 0.0
        %1016 = vst.msk [vmem:[%s998 + $0x1] sm:$0xff] %vm991, %v983
        %1017 = vst.msk [vmem:[%s998 + $0x11] sm:$0xff] %vm991, %v984
        %1018 = vst.msk [vmem:[%s998 + $0x21] sm:$0xff] %vm991, %v985
        %1019 = vst.msk [vmem:[%s998 + $0x31] sm:$0xff] %vm991, %v986
        %1020 = vst.msk [vmem:[%s998 + $0x41] sm:$0xff] %vm991, %v987
        %1021 = vst.msk [vmem:[%s998 + $0x51] sm:$0xff] %vm991, %v988
        %1022 = vst.msk [vmem:[%s998 + $0x61] sm:$0xff] %vm991, %v989
        %1023 = vst.msk [vmem:[%s998 + $0x71] sm:$0xff] %vm991, %v990
        %v1024 = vld [vmem:[#allocation3] sm:$0xff]
        %v1025 = vld [vmem:[#allocation3 + $0x10] sm:$0xff]
        %v1026 = vld [vmem:[#allocation3 + $0x20] sm:$0xff]
        %v1027 = vld [vmem:[#allocation3 + $0x30] sm:$0xff]
        %v1028 = vld [vmem:[#allocation3 + $0x40] sm:$0xff]
        %v1029 = vld [vmem:[#allocation3 + $0x50] sm:$0xff]
        %v1030 = vld [vmem:[#allocation3 + $0x60] sm:$0xff]
        %v1031 = vld [vmem:[#allocation3 + $0x70] sm:$0xff]
        %v1032 = vld [vmem:[%s4] sm:$0x1]
        %v1033 = vperm.slane %v1032, 0
        %v1034 = vmul.f32 %v1024, %v1033
        %v1035 = vmul.f32 %v1025, %v1033
        %v1036 = vmul.f32 %v1026, %v1033
        %v1037 = vmul.f32 %v1027, %v1033
        %v1038 = vmul.f32 %v1028, %v1033
        %v1039 = vmul.f32 %v1029, %v1033
        %v1040 = vmul.f32 %v1030, %v1033
        %v1041 = vmul.f32 %v1031, %v1033
        %v1042 = vld [vmem:[#allocation3 + $0x1] sm:$0xff]
        %v1043 = vld [vmem:[#allocation3 + $0x11] sm:$0xff]
        %v1044 = vld [vmem:[#allocation3 + $0x21] sm:$0xff]
        %v1045 = vld [vmem:[#allocation3 + $0x31] sm:$0xff]
        %v1046 = vld [vmem:[#allocation3 + $0x41] sm:$0xff]
        %v1047 = vld [vmem:[#allocation3 + $0x51] sm:$0xff]
        %v1048 = vld [vmem:[#allocation3 + $0x61] sm:$0xff]
        %v1049 = vld [vmem:[#allocation3 + $0x71] sm:$0xff]
        %v1050 = vld [vmem:[%s4 + $0x1] sm:$0x1]
        %v1051 = vperm.slane %v1050, 0
        %v1052 = vmul.f32 %v1042, %v1051
        %v1053 = vmul.f32 %v1043, %v1051
        %v1054 = vmul.f32 %v1044, %v1051
        %v1055 = vmul.f32 %v1045, %v1051
        %v1056 = vmul.f32 %v1046, %v1051
        %v1057 = vmul.f32 %v1047, %v1051
        %v1058 = vmul.f32 %v1048, %v1051
        %v1059 = vmul.f32 %v1049, %v1051
        %v1060 = vadd.f32 %v1034, %v1052
        %v1061 = vadd.f32 %v1035, %v1053
        %v1062 = vadd.f32 %v1036, %v1054
        %v1063 = vadd.f32 %v1037, %v1055
        %v1064 = vadd.f32 %v1038, %v1056
        %v1065 = vadd.f32 %v1039, %v1057
        %v1066 = vadd.f32 %v1040, %v1058
        %v1067 = vadd.f32 %v1041, %v1059
        %v1068 = vld [vmem:[#allocation3 + $0x2] sm:$0xff]
        %v1069 = vld [vmem:[#allocation3 + $0x12] sm:$0xff]
        %v1070 = vld [vmem:[#allocation3 + $0x22] sm:$0xff]
        %v1071 = vld [vmem:[#allocation3 + $0x32] sm:$0xff]
        %v1072 = vld [vmem:[#allocation3 + $0x42] sm:$0xff]
        %v1073 = vld [vmem:[#allocation3 + $0x52] sm:$0xff]
        %v1074 = vld [vmem:[#allocation3 + $0x62] sm:$0xff]
        %v1075 = vld [vmem:[#allocation3 + $0x72] sm:$0xff]
        %v1076 = vld [vmem:[%s4 + $0x2] sm:$0x1]
        %v1077 = vperm.slane %v1076, 0
        %v1078 = vmul.f32 %v1068, %v1077
        %v1079 = vmul.f32 %v1069, %v1077
        %v1080 = vmul.f32 %v1070, %v1077
        %v1081 = vmul.f32 %v1071, %v1077
        %v1082 = vmul.f32 %v1072, %v1077
        %v1083 = vmul.f32 %v1073, %v1077
        %v1084 = vmul.f32 %v1074, %v1077
        %v1085 = vmul.f32 %v1075, %v1077
        %v1086 = vadd.f32 %v1060, %v1078
        %v1087 = vadd.f32 %v1061, %v1079
        %v1088 = vadd.f32 %v1062, %v1080
        %v1089 = vadd.f32 %v1063, %v1081
        %v1090 = vadd.f32 %v1064, %v1082
        %v1091 = vadd.f32 %v1065, %v1083
        %v1092 = vadd.f32 %v1066, %v1084
        %v1093 = vadd.f32 %v1067, %v1085
        %v1094 = vld [vmem:[%s998] sm:$0xff]
        %v1095 = vld [vmem:[%s998 + $0x10] sm:$0xff]
        %v1096 = vld [vmem:[%s998 + $0x20] sm:$0xff]
        %v1097 = vld [vmem:[%s998 + $0x30] sm:$0xff]
        %v1098 = vld [vmem:[%s998 + $0x40] sm:$0xff]
        %v1099 = vld [vmem:[%s998 + $0x50] sm:$0xff]
        %v1100 = vld [vmem:[%s998 + $0x60] sm:$0xff]
        %v1101 = vld [vmem:[%s998 + $0x70] sm:$0xff]
        %v1102 = vld [vmem:[%s4 + $0x3] sm:$0x1]
        %v1103 = vperm.slane %v1102, 0
        %v1104 = vmul.f32 %v1094, %v1103
        %v1105 = vmul.f32 %v1095, %v1103
        %v1106 = vmul.f32 %v1096, %v1103
        %v1107 = vmul.f32 %v1097, %v1103
        %v1108 = vmul.f32 %v1098, %v1103
        %v1109 = vmul.f32 %v1099, %v1103
        %v1110 = vmul.f32 %v1100, %v1103
        %v1111 = vmul.f32 %v1101, %v1103
        %v1112 = vadd.f32 %v1086, %v1104
        %v1113 = vadd.f32 %v1087, %v1105
        %v1114 = vadd.f32 %v1088, %v1106
        %v1115 = vadd.f32 %v1089, %v1107
        %v1116 = vadd.f32 %v1090, %v1108
        %v1117 = vadd.f32 %v1091, %v1109
        %v1118 = vadd.f32 %v1092, %v1110
        %v1119 = vadd.f32 %v1093, %v1111
        %v1120 = vld [vmem:[%s998 + $0x1] sm:$0xff]
        %v1121 = vld [vmem:[%s998 + $0x11] sm:$0xff]
        %v1122 = vld [vmem:[%s998 + $0x21] sm:$0xff]
        %v1123 = vld [vmem:[%s998 + $0x31] sm:$0xff]
        %v1124 = vld [vmem:[%s998 + $0x41] sm:$0xff]
        %v1125 = vld [vmem:[%s998 + $0x51] sm:$0xff]
        %v1126 = vld [vmem:[%s998 + $0x61] sm:$0xff]
        %v1127 = vld [vmem:[%s998 + $0x71] sm:$0xff]
        %v1128 = vld [vmem:[%s4 + $0x4] sm:$0x1]
        %v1129 = vperm.slane %v1128, 0
        %v1130 = vmul.f32 %v1120, %v1129
        %v1131 = vmul.f32 %v1121, %v1129
        %v1132 = vmul.f32 %v1122, %v1129
        %v1133 = vmul.f32 %v1123, %v1129
        %v1134 = vmul.f32 %v1124, %v1129
        %v1135 = vmul.f32 %v1125, %v1129
        %v1136 = vmul.f32 %v1126, %v1129
        %v1137 = vmul.f32 %v1127, %v1129
        %v1138 = vadd.f32 %v1112, %v1130
        %v1139 = vadd.f32 %v1113, %v1131
        %v1140 = vadd.f32 %v1114, %v1132
        %v1141 = vadd.f32 %v1115, %v1133
        %v1142 = vadd.f32 %v1116, %v1134
        %v1143 = vadd.f32 %v1117, %v1135
        %v1144 = vadd.f32 %v1118, %v1136
        %v1145 = vadd.f32 %v1119, %v1137
        %v1146 = vld [vmem:[%s998 + $0x2] sm:$0xff]
        %v1147 = vld [vmem:[%s998 + $0x12] sm:$0xff]
        %v1148 = vld [vmem:[%s998 + $0x22] sm:$0xff]
        %v1149 = vld [vmem:[%s998 + $0x32] sm:$0xff]
        %v1150 = vld [vmem:[%s998 + $0x42] sm:$0xff]
        %v1151 = vld [vmem:[%s998 + $0x52] sm:$0xff]
        %v1152 = vld [vmem:[%s998 + $0x62] sm:$0xff]
        %v1153 = vld [vmem:[%s998 + $0x72] sm:$0xff]
        %v1154 = vld [vmem:[%s4 + $0x5] sm:$0x1]
        %v1155 = vperm.slane %v1154, 0
        %v1156 = vmul.f32 %v1146, %v1155
        %v1157 = vmul.f32 %v1147, %v1155
        %v1158 = vmul.f32 %v1148, %v1155
        %v1159 = vmul.f32 %v1149, %v1155
        %v1160 = vmul.f32 %v1150, %v1155
        %v1161 = vmul.f32 %v1151, %v1155
        %v1162 = vmul.f32 %v1152, %v1155
        %v1163 = vmul.f32 %v1153, %v1155
        %v1164 = vadd.f32 %v1138, %v1156
        %v1165 = vadd.f32 %v1139, %v1157
        %v1166 = vadd.f32 %v1140, %v1158
        %v1167 = vadd.f32 %v1141, %v1159
        %v1168 = vadd.f32 %v1142, %v1160
        %v1169 = vadd.f32 %v1143, %v1161
        %v1170 = vadd.f32 %v1144, %v1162
        %v1171 = vadd.f32 %v1145, %v1163
        %s1172 = scalar_lea.vmem [#allocation3], 32
        %v1173 = vld [vmem:[%s1172] sm:$0xff]
        %v1174 = vld [vmem:[%s1172 + $0x10] sm:$0xff]
        %v1175 = vld [vmem:[%s1172 + $0x20] sm:$0xff]
        %v1176 = vld [vmem:[%s1172 + $0x30] sm:$0xff]
        %v1177 = vld [vmem:[%s1172 + $0x40] sm:$0xff]
        %v1178 = vld [vmem:[%s1172 + $0x50] sm:$0xff]
        %v1179 = vld [vmem:[%s1172 + $0x60] sm:$0xff]
        %v1180 = vld [vmem:[%s1172 + $0x70] sm:$0xff]
        %v1181 = vld [vmem:[%s4 + $0x6] sm:$0x1]
        %v1182 = vperm.slane %v1181, 0
        %v1183 = vmul.f32 %v1173, %v1182
        %v1184 = vmul.f32 %v1174, %v1182
        %v1185 = vmul.f32 %v1175, %v1182
        %v1186 = vmul.f32 %v1176, %v1182
        %v1187 = vmul.f32 %v1177, %v1182
        %v1188 = vmul.f32 %v1178, %v1182
        %v1189 = vmul.f32 %v1179, %v1182
        %v1190 = vmul.f32 %v1180, %v1182
        %v1191 = vadd.f32 %v1164, %v1183
        %v1192 = vadd.f32 %v1165, %v1184
        %v1193 = vadd.f32 %v1166, %v1185
        %v1194 = vadd.f32 %v1167, %v1186
        %v1195 = vadd.f32 %v1168, %v1187
        %v1196 = vadd.f32 %v1169, %v1188
        %v1197 = vadd.f32 %v1170, %v1189
        %v1198 = vadd.f32 %v1171, %v1190
        %v1199 = vld [vmem:[%s1172 + $0x1] sm:$0xff]
        %v1200 = vld [vmem:[%s1172 + $0x11] sm:$0xff]
        %v1201 = vld [vmem:[%s1172 + $0x21] sm:$0xff]
        %v1202 = vld [vmem:[%s1172 + $0x31] sm:$0xff]
        %v1203 = vld [vmem:[%s1172 + $0x41] sm:$0xff]
        %v1204 = vld [vmem:[%s1172 + $0x51] sm:$0xff]
        %v1205 = vld [vmem:[%s1172 + $0x61] sm:$0xff]
        %v1206 = vld [vmem:[%s1172 + $0x71] sm:$0xff]
        %v1207 = vld [vmem:[%s4 + $0x7] sm:$0x1]
        %v1208 = vperm.slane %v1207, 0
        %v1209 = vmul.f32 %v1199, %v1208
        %v1210 = vmul.f32 %v1200, %v1208
        %v1211 = vmul.f32 %v1201, %v1208
        %v1212 = vmul.f32 %v1202, %v1208
        %v1213 = vmul.f32 %v1203, %v1208
        %v1214 = vmul.f32 %v1204, %v1208
        %v1215 = vmul.f32 %v1205, %v1208
        %v1216 = vmul.f32 %v1206, %v1208
        %v1217 = vadd.f32 %v1191, %v1209
        %v1218 = vadd.f32 %v1192, %v1210
        %v1219 = vadd.f32 %v1193, %v1211
        %v1220 = vadd.f32 %v1194, %v1212
        %v1221 = vadd.f32 %v1195, %v1213
        %v1222 = vadd.f32 %v1196, %v1214
        %v1223 = vadd.f32 %v1197, %v1215
        %v1224 = vadd.f32 %v1198, %v1216
        %v1225 = vld [vmem:[%s1172 + $0x2] sm:$0xff]
        %v1226 = vld [vmem:[%s1172 + $0x12] sm:$0xff]
        %v1227 = vld [vmem:[%s1172 + $0x22] sm:$0xff]
        %v1228 = vld [vmem:[%s1172 + $0x32] sm:$0xff]
        %v1229 = vld [vmem:[%s1172 + $0x42] sm:$0xff]
        %v1230 = vld [vmem:[%s1172 + $0x52] sm:$0xff]
        %v1231 = vld [vmem:[%s1172 + $0x62] sm:$0xff]
        %v1232 = vld [vmem:[%s1172 + $0x72] sm:$0xff]
        %v1233 = vld [vmem:[%s4 + $0x8] sm:$0x1]
        %v1234 = vperm.slane %v1233, 0
        %v1235 = vmul.f32 %v1225, %v1234
        %v1236 = vmul.f32 %v1226, %v1234
        %v1237 = vmul.f32 %v1227, %v1234
        %v1238 = vmul.f32 %v1228, %v1234
        %v1239 = vmul.f32 %v1229, %v1234
        %v1240 = vmul.f32 %v1230, %v1234
        %v1241 = vmul.f32 %v1231, %v1234
        %v1242 = vmul.f32 %v1232, %v1234
        %v1243 = vadd.f32 %v1217, %v1235
        %v1244 = vadd.f32 %v1218, %v1236
        %v1245 = vadd.f32 %v1219, %v1237
        %v1246 = vadd.f32 %v1220, %v1238
        %v1247 = vadd.f32 %v1221, %v1239
        %v1248 = vadd.f32 %v1222, %v1240
        %v1249 = vadd.f32 %v1223, %v1241
        %v1250 = vadd.f32 %v1224, %v1242
        %v1251 = vld [vmem:[%s5] sm:$0xff]
        %v1252 = vld [vmem:[%s5 + $0x8] sm:$0xff]
        %v1253 = vld [vmem:[%s5 + $0x10] sm:$0xff]
        %v1254 = vld [vmem:[%s5 + $0x18] sm:$0xff]
        %v1255 = vld [vmem:[%s5 + $0x20] sm:$0xff]
        %v1256 = vld [vmem:[%s5 + $0x28] sm:$0xff]
        %v1257 = vld [vmem:[%s5 + $0x30] sm:$0xff]
        %v1258 = vld [vmem:[%s5 + $0x38] sm:$0xff]
        %v1259 = vld [vmem:[%s6] sm:$0x1]
        %v1261 = vperm.slane %v1259, 0
        %v1264 = vsel %vm991, %v1243, 0
        %v1267 = vsel %vm991, %v1244, 0
        %v1270 = vsel %vm991, %v1245, 0
        %v1273 = vsel %vm991, %v1246, 0
        %v1276 = vsel %vm991, %v1247, 0
        %v1279 = vsel %vm991, %v1248, 0
        %v1282 = vsel %vm991, %v1249, 0
        %v1285 = vsel %vm991, %v1250, 0
        %1287 = vmatpush.msra.mxu0 0.0
        %1288 = vmatpush.msra.mxu0 0.0
        %1289 = vmatpush.msra.mxu0 0.0
        %1290 = vmatpush.msra.mxu0 0.0
        %1291 = vmatpush.msra.mxu0 0.0
        %1292 = vmatpush.msra.mxu0 0.0
        %1293 = vmatpush.msra.mxu0 0.0
        %1294 = vmatpush.msra.mxu0 0.0
        %1295 = vmatpush.msra.mxu0 %v1258
        %1296 = vmatpush.msra.mxu0 %v1257
        %1297 = vmatpush.msra.mxu0 %v1256
        %1298 = vmatpush.msra.mxu0 %v1255
        %1299 = vmatpush.msra.mxu0 %v1254
        %1300 = vmatpush.msra.mxu0 %v1253
        %1301 = vmatpush.msra.mxu0 %v1252
        %1302 = vmatpush.msra.mxu0 %v1251
        %1303 = vmatmul.f32.gmra.mxu0 %v1264
        %v1304 = vpop.f32.mrf.mxu0
        %v1305 = vadd.f32 %v1261, %v1304
        %1306 = vmatmul.f32.gmra.mxu0 %v1267
        %v1307 = vpop.f32.mrf.mxu0
        %v1308 = vadd.f32 %v1261, %v1307
        %1309 = vmatmul.f32.gmra.mxu0 %v1270
        %v1310 = vpop.f32.mrf.mxu0
        %v1311 = vadd.f32 %v1261, %v1310
        %1312 = vmatmul.f32.gmra.mxu0 %v1273
        %v1313 = vpop.f32.mrf.mxu0
        %v1314 = vadd.f32 %v1261, %v1313
        %1315 = vmatmul.f32.gmra.mxu0 %v1276
        %v1316 = vpop.f32.mrf.mxu0
        %v1317 = vadd.f32 %v1261, %v1316
        %1318 = vmatmul.f32.gmra.mxu0 %v1279
        %v1319 = vpop.f32.mrf.mxu0
        %v1320 = vadd.f32 %v1261, %v1319
        %1321 = vmatmul.f32.gmra.mxu0 %v1282
        %v1322 = vpop.f32.mrf.mxu0
        %v1323 = vadd.f32 %v1261, %v1322
        %1324 = vmatmul.f32.gmra.mxu0 %v1285
        %v1325 = vpop.f32.mrf.mxu0
        %v1326 = vadd.f32 %v1261, %v1325
        %1327 = vdwg.mxu0
        %v1328 = vmax.f32 %v1305, 0.0
        %v1329 = vmax.f32 %v1308, 0.0
        %v1330 = vmax.f32 %v1311, 0.0
        %v1331 = vmax.f32 %v1314, 0.0
        %v1332 = vmax.f32 %v1317, 0.0
        %v1333 = vmax.f32 %v1320, 0.0
        %v1334 = vmax.f32 %v1323, 0.0
        %v1335 = vmax.f32 %v1326, 0.0
        %1336 = vst [vmem:[%s271] sm:$0xff] %v1328
        %1337 = vst [vmem:[%s271 + $0x8] sm:$0xff] %v1329
        %1338 = vst [vmem:[%s271 + $0x10] sm:$0xff] %v1330
        %1339 = vst [vmem:[%s271 + $0x18] sm:$0xff] %v1331
        %1340 = vst [vmem:[%s271 + $0x20] sm:$0xff] %v1332
        %1341 = vst [vmem:[%s271 + $0x28] sm:$0xff] %v1333
        %1342 = vst [vmem:[%s271 + $0x30] sm:$0xff] %v1334
        %1343 = vst [vmem:[%s271 + $0x38] sm:$0xff] %v1335
        %s1344 = sand.u32 %s181, 1
        %s1345 = scalar_lea.sflag [#allocation5], %s1344
        %s1346 = sand.u32 %s181, 1
        %s1347 = smul.addr %s1346, 64
        %s1348 = scalar_lea.vmem [#allocation4], %s1347
        // Predicated region
        $region49: #{tpu_custom_call.1} parent=47 // pred_check
          %p1349 = pneg %p191
        $region50: #{tpu_custom_call.1} parent=47 // pred_check_branch
          %1351 = sbr.rel (%p1349) target = $region52
        $region51: #{tpu_custom_call.1} parent=47 // pred_region
          %1353 = vsyncadd %s1345, 0
          %s1354 = smul.addr %s21, 8
          %s1355 = smul.addr %s1354, 8
          %s1356 = scalar_lea.hbm %s7, %s1355
          %s1357 = sshll.u32 %s1348, 4
          %s1358 = int_to_ptr.vmem [resolvable:$true] %s1357
          %s1359 = sshll.u32 %s1356, 4
          %s1360 = int_to_ptr.hbm [resolvable:$true] %s1359
          %1365 = dma.vmem_to_hbm [thread:$0]  %s1358, 1024, %s1360, %s1345, 128, 128, 8
        $region52: #{tpu_custom_call.1} parent=47 // pred_fallthru
          _
      $region48: #{tpu_custom_call.1} parent=5 // pred_fallthru
        _
      %p1366 = scmp.le.s32.totalorder 2, %s16
      // Predicated region
      $region53: #{tpu_custom_call.1} parent=5 // pred_check
        %p1367 = pneg %p1366
      $region54: #{tpu_custom_call.1} parent=5 // pred_check_branch
        %1369 = sbr.rel (%p1367) target = $region56
      $region55: #{tpu_custom_call.1} parent=5 // pred_region
        %s1370 = ssub.s32 %s16, 2
        // Predicated region
        $region57: #{tpu_custom_call.1} parent=55 // pred_check
          %p1371 = pneg %p197
        $region58: #{tpu_custom_call.1} parent=55 // pred_check_branch
          %1373 = sbr.rel (%p1371) target = $region60
        $region59: #{tpu_custom_call.1} parent=55 // pred_region
          %s1374 = sand.u32 %s182, 1
          %s1375 = scalar_lea.sflag [#allocation5], %s1374
          %s1376 = sand.u32 %s182, 1
          %s1377 = smul.addr %s1376, 64
          %s1378 = scalar_lea.vmem [#allocation4], %s1377
          %1380 = dma.done %s1375, 1024
        $region60: #{tpu_custom_call.1} parent=55 // pred_fallthru
          _
      $region56: #{tpu_custom_call.1} parent=5 // pred_fallthru
        _
    $region6: #{tpu_custom_call.1} parent=1 // loop_footer
      %s20 = sadd.s32 1, %s16
    $region7: #{tpu_custom_call.1} parent=1 // loop_footer_branch
      %15 = sbr.rel target = $region3
    $region8: #{tpu_custom_call.1} parent=1 // loop_exit
      _
    %1381 = vsyncpa [#allocation5], 1
    %s1382 = scalar_lea.sflag [#allocation5], 1
    %1383 = vsyncpa %s1382, 1

</llo_original>
